<compile_context>
chip_gen: v5e
topology: v5e:2x2
jax: 0.10.0
libtpu: 0.0.40
codegen_flags: <defaults>
</compile_context>

<pallas_src>
import math
from functools import partial

import jax
import jax.numpy as jnp
from jax.experimental import pallas as pl
from jax.experimental.pallas import tpu as pltpu

NEG_BIG = -1e30  # used to exclude non-selected rows from the per-graph max


# ----------------------------- fused kernel --------------------------------

def gnn_fused_kernel(a_ref, x_ref, sameg_ref, lt_ref, eye_ref, gsel_ref,
                     w1_ref, b1_ref, p1_ref,
                     w2_ref, b2_ref, p2_ref,
                     w3_ref, b3_ref, p3_ref,
                     lw1_ref, lb1_ref, lw2_ref, lb2_ref,
                     out_ref, *, num_graphs, k_seq):
    """Whole GNN forward: 3 x (GCNConv + ReLU + TopKPooling + [max|mean]) + head.

    a_ref    : [N,N] bf16, A + I (self-loops), entries exactly {0,1}
    x_ref    : [N,C_in] f32 node features
    sameg_ref: [N,N] f32, 1.0 iff nodes i,j are in the same graph
    lt_ref   : [N,N] f32, 1.0 iff j < i           (top-k tie-break by index)
    eye_ref  : [N,N] f32 identity                 (exact vector transposes)
    gsel_ref : [N,B] f32 one-hot graph membership (readout segmentation)
    out_ref  : [B, out_ch] f32
    """
    f32 = jnp.float32
    a_bf = a_ref[...]                                  # [N,N] bf16
    same_g = sameg_ref[...]
    lt = lt_ref[...]
    eye = eye_ref[...]
    gsel = gsel_ref[...]
    n = a_bf.shape[0]

    x = x_ref[...].astype(f32)                         # [N, C_in]
    mask = jnp.ones((n, 1), f32)                       # active-node mask (all active)

    layer_params = ((w1_ref, b1_ref, p1_ref),
                    (w2_ref, b2_ref, p2_ref),
                    (w3_ref, b3_ref, p3_ref))
    readouts = []
    for (w_ref, b_ref, p_ref), k in zip(layer_params, k_seq):
        w = w_ref[...]
        b = b_ref[...]
        p = p_ref[...]                                 # [1,C], pre-normalized

        # exact [N,1] -> [1,N] transpose of the 0/1 mask (VPU mul + sublane reduce)
        mask_row = jnp.sum(mask * eye, axis=0, keepdims=True)            # [1,N]

        # --- GCNConv: D^-1/2 (A+I) D^-1/2 X W + b, restricted to active nodes.
        # Degrees count active neighbours only (exact bf16 0/1 matvec, f32 acc).
        deg = jnp.dot(a_bf, mask.astype(jnp.bfloat16),
                      preferred_element_type=f32)                        # [N,1]
        dinv = jnp.where(deg > 0.0, jax.lax.rsqrt(deg), 0.0)             # [N,1]
        xw = jnp.dot(dinv * x, w, preferred_element_type=f32)            # [N,C]
        agg = jnp.dot(a_bf, xw.astype(jnp.bfloat16),
                      preferred_element_type=f32)                        # [N,C]
        h = jnp.maximum(dinv * agg + b, 0.0) * mask                      # ReLU + row mask

        # --- TopKPooling score (projection vector pre-normalized on host).
        s_col = jnp.sum(h * p, axis=-1, keepdims=True)                   # [N,1]
        s_row = jnp.sum(s_col * eye, axis=0, keepdims=True)              # [1,N] exact T

        # --- in-kernel top-k per graph: rank_i = #{active same-graph j that
        #     beat i}, tie-break by lower index; select rank < k (exactly k).
        gt = (s_row > s_col).astype(f32)
        eq = (s_row == s_col).astype(f32)
        beats = same_g * mask_row * (gt + eq * lt)                       # [N,N]
        rank = jnp.sum(beats, axis=1, keepdims=True)                     # [N,1]
        sel = mask * (rank < float(k)).astype(f32)                       # [N,1]

        # --- gating x_sel * tanh(score); non-selected rows become zero.
        gated = h * jnp.tanh(s_col) * sel                                # [N,C]

        # --- fused [global_max | global_mean] readout per graph (static k).
        parts = []
        for gi in range(num_graphs):
            ind = gsel[:, gi:gi + 1]                                     # [N,1]
            selg = ind * sel
            mx = jnp.max(gated + (1.0 - selg) * NEG_BIG,
                         axis=0, keepdims=True)                          # [1,C]
            mn = jnp.sum(gated * ind, axis=0, keepdims=True) * (1.0 / k) # [1,C]
            parts.append(jnp.concatenate([mx, mn], axis=-1))             # [1,2C]
        readouts.append(jnp.concatenate(parts, axis=0))                  # [B,2C]

        # next-layer state: masked features + new active mask (no gathers)
        x = gated
        mask = sel

    # --- head: x1 + x2 + x3 ; Linear + ReLU ; Linear
    r = readouts[0] + readouts[1] + readouts[2]                          # [B,2C]
    y = jnp.maximum(jnp.dot(r, lw1_ref[...], preferred_element_type=f32)
                    + lb1_ref[...], 0.0)
    # TODO(synk): F.dropout(p=0.5) omitted -- identity in eval mode.
    out_ref[...] = (jnp.dot(y, lw2_ref[...], preferred_element_type=f32)
                    + lb2_ref[...])


# ----------------------------- wrapper --------------------------------------

def gnn_forward(params, x, a_hat, same_g, lt, eye, gsel, *,
                nodes_per_graph, num_graphs, ratio=0.8):
    out_ch = params["lw2"].shape[1]
    # static per-layer k (equal-size graphs): k = ceil(ratio * current nodes)
    k_seq = []
    npg = nodes_per_graph
    for _ in range(3):
        k = int(math.ceil(ratio * npg))
        k_seq.append(k)
        npg = k

    kernel = partial(gnn_fused_kernel, num_graphs=num_graphs, k_seq=tuple(k_seq))
    operands = (a_hat, x, same_g, lt, eye, gsel,
                params["w1"], params["b1"], params["p1n"],
                params["w2"], params["b2"], params["p2n"],
                params["w3"], params["b3"], params["p3n"],
                params["lw1"], params["lb1"], params["lw2"], params["lb2"])
    return pl.pallas_call(
        kernel,
        out_shape=jax.ShapeDtypeStruct((num_graphs, out_ch), jnp.float32),
        in_specs=[pl.BlockSpec(memory_space=pltpu.MemorySpace.VMEM)] * len(operands),
        out_specs=pl.BlockSpec(memory_space=pltpu.MemorySpace.VMEM),
        compiler_params=pltpu.CompilerParams(vmem_limit_bytes=32 * 1024 * 1024),
    )(*operands)


# ----------------------------- main ------------------------------------------

if __name__ == "__main__":
    IN_CH, OUT_CH, HID = 4, 2, 64
    B, NP = 2, 10                    # 2 graphs, 10 nodes each
    N = B * NP

    key = jax.random.PRNGKey(0)
    ks = jax.random.split(key, 16)

    def init(k, shape, scale=0.1):
        return (scale * jax.random.normal(k, shape)).astype(jnp.float32)

    def unit(v):                     # TopK projection vector, normalized once on host
        return v / jnp.sqrt(jnp.sum(v * v))

    # weights stored transposed as [C_in, C_out]; biases as [1, C_out]
    params = {
        "w1": init(ks[0], (IN_CH, HID)), "b1": init(ks[1], (1, HID)),
        "p1n": unit(init(ks[2], (1, HID))),
        "w2": init(ks[3], (HID, HID)),  "b2": init(ks[4], (1, HID)),
        "p2n": unit(init(ks[5], (1, HID))),
        "w3": init(ks[6], (HID, HID)),  "b3": init(ks[7], (1, HID)),
        "p3n": unit(init(ks[8], (1, HID))),
        "lw1": init(ks[9], (2 * HID, HID)), "lb1": init(ks[10], (1, HID)),
        "lw2": init(ks[11], (HID, OUT_CH)), "lb2": init(ks[12], (1, OUT_CH)),
    }
    # NOTE: self.item_embedding (64, 64) is unused in the reference forward().

    # node features
    x = jax.random.normal(ks[13], (N, IN_CH), dtype=jnp.float32)

    # deterministic symmetric adjacency: per-graph ring + chord (i, i+3)
    adj = [[0.0] * N for _ in range(N)]
    for g in range(B):
        off = g * NP
        for i in range(NP):
            for d in (1, 3):
                j = (i + d) % NP
                adj[off + i][off + j] = 1.0
                adj[off + j][off + i] = 1.0
    a = jnp.array(adj, dtype=jnp.float32)
    # A_hat = A + I, stored bf16 (exact for {0,1}) -> half HBM/VMEM traffic for A
    a_hat = (a + jnp.eye(N, dtype=jnp.float32)).astype(jnp.bfloat16)

    # static graph-structure constants for the fused kernel
    batch = jnp.repeat(jnp.arange(B, dtype=jnp.int32), NP)               # graph id per node
    same_g = (batch[:, None] == batch[None, :]).astype(jnp.float32)      # [N,N]
    idx = jnp.arange(N, dtype=jnp.int32)
    lt = (idx[None, :] < idx[:, None]).astype(jnp.float32)               # lt[i,j] = (j < i)
    eye = jnp.eye(N, dtype=jnp.float32)                                  # [N,N]
    gsel = (batch[:, None] == jnp.arange(B, dtype=jnp.int32)[None, :]
            ).astype(jnp.float32)                                        # [N,B] one-hot

    fwd = jax.jit(partial(gnn_forward, nodes_per_graph=NP, num_graphs=B))
    out = jax.block_until_ready(fwd(params, x, a_hat, same_g, lt, eye, gsel))
    assert out.shape == (B, OUT_CH)
    assert bool(jnp.all(jnp.isfinite(out)))
    print("KERNEL_OK")
</pallas_src>

<mosaic_0001>
module attributes {stable_mosaic.version = 11 : i64} {
  func.func @gnn_fused_kernel(%arg0: memref<20x20xbf16, #tpu.memory_space<vmem>>, %arg1: memref<20x4xf32, #tpu.memory_space<vmem>>, %arg2: memref<20x20xf32, #tpu.memory_space<vmem>>, %arg3: memref<20x20xf32, #tpu.memory_space<vmem>>, %arg4: memref<20x20xf32, #tpu.memory_space<vmem>>, %arg5: memref<20x2xf32, #tpu.memory_space<vmem>>, %arg6: memref<4x64xf32, #tpu.memory_space<vmem>>, %arg7: memref<1x64xf32, #tpu.memory_space<vmem>>, %arg8: memref<1x64xf32, #tpu.memory_space<vmem>>, %arg9: memref<64x64xf32, #tpu.memory_space<vmem>>, %arg10: memref<1x64xf32, #tpu.memory_space<vmem>>, %arg11: memref<1x64xf32, #tpu.memory_space<vmem>>, %arg12: memref<64x64xf32, #tpu.memory_space<vmem>>, %arg13: memref<1x64xf32, #tpu.memory_space<vmem>>, %arg14: memref<1x64xf32, #tpu.memory_space<vmem>>, %arg15: memref<128x64xf32, #tpu.memory_space<vmem>>, %arg16: memref<1x64xf32, #tpu.memory_space<vmem>>, %arg17: memref<64x2xf32, #tpu.memory_space<vmem>>, %arg18: memref<1x2xf32, #tpu.memory_space<vmem>>, %arg19: memref<2x2xf32, #tpu.memory_space<vmem>>) attributes {dimension_semantics = [], scalar_prefetch = 0 : i64, scratch_operands = 0 : i64, tpu.core_type = #tpu.core_type<tc>} {
    %c0 = arith.constant 0 : index
    %c0_0 = arith.constant 0 : index
    %0 = vector.load %arg0[%c0, %c0_0] : memref<20x20xbf16, #tpu.memory_space<vmem>>, vector<20x20xbf16>
    %c0_1 = arith.constant 0 : index
    %c0_2 = arith.constant 0 : index
    %1 = vector.load %arg2[%c0_1, %c0_2] : memref<20x20xf32, #tpu.memory_space<vmem>>, vector<20x20xf32>
    %c0_3 = arith.constant 0 : index
    %c0_4 = arith.constant 0 : index
    %2 = vector.load %arg3[%c0_3, %c0_4] : memref<20x20xf32, #tpu.memory_space<vmem>>, vector<20x20xf32>
    %c0_5 = arith.constant 0 : index
    %c0_6 = arith.constant 0 : index
    %3 = vector.load %arg4[%c0_5, %c0_6] : memref<20x20xf32, #tpu.memory_space<vmem>>, vector<20x20xf32>
    %c0_7 = arith.constant 0 : index
    %c0_8 = arith.constant 0 : index
    %4 = vector.load %arg5[%c0_7, %c0_8] : memref<20x2xf32, #tpu.memory_space<vmem>>, vector<20x2xf32>
    %c0_9 = arith.constant 0 : index
    %c0_10 = arith.constant 0 : index
    %5 = vector.load %arg1[%c0_9, %c0_10] : memref<20x4xf32, #tpu.memory_space<vmem>>, vector<20x4xf32>
    %cst = arith.constant 1.000000e+00 : f32
    %6 = vector.broadcast %cst : f32 to vector<20x1xf32>
    %c0_11 = arith.constant 0 : index
    %c0_12 = arith.constant 0 : index
    %7 = vector.load %arg6[%c0_11, %c0_12] : memref<4x64xf32, #tpu.memory_space<vmem>>, vector<4x64xf32>
    %c0_13 = arith.constant 0 : index
    %c0_14 = arith.constant 0 : index
    %8 = vector.load %arg7[%c0_13, %c0_14] : memref<1x64xf32, #tpu.memory_space<vmem>>, vector<1x64xf32>
    %c0_15 = arith.constant 0 : index
    %c0_16 = arith.constant 0 : index
    %9 = vector.load %arg8[%c0_15, %c0_16] : memref<1x64xf32, #tpu.memory_space<vmem>>, vector<1x64xf32>
    %10 = vector.broadcast %6 : vector<20x1xf32> to vector<20x20xf32>
    %11 = arith.mulf %10, %3 : vector<20x20xf32>
    %cst_17 = arith.constant dense<0.000000e+00> : vector<20xf32>
    %12 = vector.multi_reduction <add>, %11, %cst_17 [0] : vector<20x20xf32> to vector<20xf32>
    %13 = vector.shape_cast %12 : vector<20xf32> to vector<1x20xf32>
    %14 = arith.truncf %6 : vector<20x1xf32> to vector<20x1xbf16>
    %cst_18 = arith.constant dense<0.000000e+00> : vector<20x1xf32>
    %15 = tpu.matmul %0, %14, %cst_18 {dimension_numbers = #tpu.dot_dimension_numbers<[1], [0], [0], [1], [0, 0, 1, 1], [], []>} : vector<20x20xbf16>, vector<20x1xbf16>, vector<20x1xf32> -> vector<20x1xf32>
    %cst_19 = arith.constant 0.000000e+00 : f32
    %16 = vector.broadcast %cst_19 : f32 to vector<20x1xf32>
    %17 = arith.cmpf ogt, %15, %16 : vector<20x1xf32>
    %18 = math.rsqrt %15 : vector<20x1xf32>
    %cst_20 = arith.constant 0.000000e+00 : f32
    %19 = vector.broadcast %cst_20 : f32 to vector<20x1xf32>
    %20 = arith.select %17, %18, %19 : vector<20x1xi1>, vector<20x1xf32>
    %21 = vector.broadcast %20 : vector<20x1xf32> to vector<20x4xf32>
    %22 = arith.mulf %21, %5 : vector<20x4xf32>
    %cst_21 = arith.constant dense<0.000000e+00> : vector<20x64xf32>
    %23 = tpu.matmul %22, %7, %cst_21 {dimension_numbers = #tpu.dot_dimension_numbers<[1], [0], [0], [1], [0, 0, 1, 1], [], []>} : vector<20x4xf32>, vector<4x64xf32>, vector<20x64xf32> -> vector<20x64xf32>
    %24 = arith.truncf %23 : vector<20x64xf32> to vector<20x64xbf16>
    %cst_22 = arith.constant dense<0.000000e+00> : vector<20x64xf32>
    %25 = tpu.matmul %0, %24, %cst_22 {dimension_numbers = #tpu.dot_dimension_numbers<[1], [0], [0], [1], [0, 0, 1, 1], [], []>} : vector<20x20xbf16>, vector<20x64xbf16>, vector<20x64xf32> -> vector<20x64xf32>
    %26 = vector.broadcast %20 : vector<20x1xf32> to vector<20x64xf32>
    %27 = arith.mulf %26, %25 : vector<20x64xf32>
    %28 = vector.broadcast %8 : vector<1x64xf32> to vector<20x64xf32>
    %29 = arith.addf %27, %28 : vector<20x64xf32>
    %cst_23 = arith.constant 0.000000e+00 : f32
    %30 = vector.broadcast %cst_23 : f32 to vector<20x64xf32>
    %31 = arith.maximumf %29, %30 : vector<20x64xf32>
    %32 = vector.broadcast %6 : vector<20x1xf32> to vector<20x64xf32>
    %33 = arith.mulf %31, %32 : vector<20x64xf32>
    %34 = vector.broadcast %9 : vector<1x64xf32> to vector<20x64xf32>
    %35 = arith.mulf %33, %34 : vector<20x64xf32>
    %cst_24 = arith.constant dense<0.000000e+00> : vector<20xf32>
    %36 = vector.multi_reduction <add>, %35, %cst_24 [1] : vector<20x64xf32> to vector<20xf32>
    %37 = vector.shape_cast %36 : vector<20xf32> to vector<20x1xf32>
    %38 = vector.broadcast %37 : vector<20x1xf32> to vector<20x20xf32>
    %39 = arith.mulf %38, %3 : vector<20x20xf32>
    %cst_25 = arith.constant dense<0.000000e+00> : vector<20xf32>
    %40 = vector.multi_reduction <add>, %39, %cst_25 [0] : vector<20x20xf32> to vector<20xf32>
    %41 = vector.shape_cast %40 : vector<20xf32> to vector<1x20xf32>
    %42 = vector.broadcast %41 : vector<1x20xf32> to vector<20x20xf32>
    %43 = vector.broadcast %37 : vector<20x1xf32> to vector<20x20xf32>
    %44 = arith.cmpf ogt, %42, %43 : vector<20x20xf32>
    %45 = arith.extui %44 : vector<20x20xi1> to vector<20x20xi32>
    %46 = arith.sitofp %45 : vector<20x20xi32> to vector<20x20xf32>
    %47 = vector.broadcast %41 : vector<1x20xf32> to vector<20x20xf32>
    %48 = vector.broadcast %37 : vector<20x1xf32> to vector<20x20xf32>
    %49 = arith.cmpf oeq, %47, %48 : vector<20x20xf32>
    %50 = arith.extui %49 : vector<20x20xi1> to vector<20x20xi32>
    %51 = arith.sitofp %50 : vector<20x20xi32> to vector<20x20xf32>
    %52 = vector.broadcast %13 : vector<1x20xf32> to vector<20x20xf32>
    %53 = arith.mulf %1, %52 : vector<20x20xf32>
    %54 = arith.mulf %51, %2 : vector<20x20xf32>
    %55 = arith.addf %46, %54 : vector<20x20xf32>
    %56 = arith.mulf %53, %55 : vector<20x20xf32>
    %cst_26 = arith.constant dense<0.000000e+00> : vector<20xf32>
    %57 = vector.multi_reduction <add>, %56, %cst_26 [1] : vector<20x20xf32> to vector<20xf32>
    %58 = vector.shape_cast %57 : vector<20xf32> to vector<20x1xf32>
    %cst_27 = arith.constant 8.000000e+00 : f32
    %59 = vector.broadcast %cst_27 : f32 to vector<20x1xf32>
    %60 = arith.cmpf olt, %58, %59 : vector<20x1xf32>
    %61 = arith.extui %60 : vector<20x1xi1> to vector<20x1xi32>
    %62 = arith.sitofp %61 : vector<20x1xi32> to vector<20x1xf32>
    %63 = arith.mulf %6, %62 : vector<20x1xf32>
    %64 = math.tanh %37 : vector<20x1xf32>
    %65 = vector.broadcast %64 : vector<20x1xf32> to vector<20x64xf32>
    %66 = arith.mulf %33, %65 : vector<20x64xf32>
    %67 = vector.broadcast %63 : vector<20x1xf32> to vector<20x64xf32>
    %68 = arith.mulf %66, %67 : vector<20x64xf32>
    %69 = vector.extract_strided_slice %4 {offsets = [0, 0], sizes = [20, 1], strides = [1, 1]} : vector<20x2xf32> to vector<20x1xf32>
    %70 = arith.mulf %69, %63 : vector<20x1xf32>
    %cst_28 = arith.constant 1.000000e+00 : f32
    %71 = vector.broadcast %cst_28 : f32 to vector<20x1xf32>
    %72 = arith.subf %71, %70 : vector<20x1xf32>
    %cst_29 = arith.constant -1.000000e+30 : f32
    %73 = vector.broadcast %cst_29 : f32 to vector<20x1xf32>
    %74 = arith.mulf %72, %73 : vector<20x1xf32>
    %75 = vector.broadcast %74 : vector<20x1xf32> to vector<20x64xf32>
    %76 = arith.addf %68, %75 : vector<20x64xf32>
    %cst_30 = arith.constant dense<0xFF800000> : vector<64xf32>
    %77 = vector.multi_reduction <maximumf>, %76, %cst_30 [0] : vector<20x64xf32> to vector<64xf32>
    %78 = vector.shape_cast %77 : vector<64xf32> to vector<1x64xf32>
    %79 = vector.broadcast %69 : vector<20x1xf32> to vector<20x64xf32>
    %80 = arith.mulf %68, %79 : vector<20x64xf32>
    %cst_31 = arith.constant dense<0.000000e+00> : vector<64xf32>
    %81 = vector.multi_reduction <add>, %80, %cst_31 [0] : vector<20x64xf32> to vector<64xf32>
    %82 = vector.shape_cast %81 : vector<64xf32> to vector<1x64xf32>
    %cst_32 = arith.constant 1.250000e-01 : f32
    %83 = vector.broadcast %cst_32 : f32 to vector<1x64xf32>
    %84 = arith.mulf %82, %83 : vector<1x64xf32>
    %85 = tpu.concatenate %78, %84 in 1 : vector<1x64xf32>, vector<1x64xf32> -> vector<1x128xf32>
    %86 = vector.extract_strided_slice %4 {offsets = [0, 1], sizes = [20, 1], strides = [1, 1]} : vector<20x2xf32> to vector<20x1xf32>
    %87 = arith.mulf %86, %63 : vector<20x1xf32>
    %cst_33 = arith.constant 1.000000e+00 : f32
    %88 = vector.broadcast %cst_33 : f32 to vector<20x1xf32>
    %89 = arith.subf %88, %87 : vector<20x1xf32>
    %cst_34 = arith.constant -1.000000e+30 : f32
    %90 = vector.broadcast %cst_34 : f32 to vector<20x1xf32>
    %91 = arith.mulf %89, %90 : vector<20x1xf32>
    %92 = vector.broadcast %91 : vector<20x1xf32> to vector<20x64xf32>
    %93 = arith.addf %68, %92 : vector<20x64xf32>
    %cst_35 = arith.constant dense<0xFF800000> : vector<64xf32>
    %94 = vector.multi_reduction <maximumf>, %93, %cst_35 [0] : vector<20x64xf32> to vector<64xf32>
    %95 = vector.shape_cast %94 : vector<64xf32> to vector<1x64xf32>
    %96 = vector.broadcast %86 : vector<20x1xf32> to vector<20x64xf32>
    %97 = arith.mulf %68, %96 : vector<20x64xf32>
    %cst_36 = arith.constant dense<0.000000e+00> : vector<64xf32>
    %98 = vector.multi_reduction <add>, %97, %cst_36 [0] : vector<20x64xf32> to vector<64xf32>
    %99 = vector.shape_cast %98 : vector<64xf32> to vector<1x64xf32>
    %cst_37 = arith.constant 1.250000e-01 : f32
    %100 = vector.broadcast %cst_37 : f32 to vector<1x64xf32>
    %101 = arith.mulf %99, %100 : vector<1x64xf32>
    %102 = tpu.concatenate %95, %101 in 1 : vector<1x64xf32>, vector<1x64xf32> -> vector<1x128xf32>
    %103 = tpu.concatenate %85, %102 in 0 : vector<1x128xf32>, vector<1x128xf32> -> vector<2x128xf32>
    %c0_38 = arith.constant 0 : index
    %c0_39 = arith.constant 0 : index
    %104 = vector.load %arg9[%c0_38, %c0_39] : memref<64x64xf32, #tpu.memory_space<vmem>>, vector<64x64xf32>
    %c0_40 = arith.constant 0 : index
    %c0_41 = arith.constant 0 : index
    %105 = vector.load %arg10[%c0_40, %c0_41] : memref<1x64xf32, #tpu.memory_space<vmem>>, vector<1x64xf32>
    %c0_42 = arith.constant 0 : index
    %c0_43 = arith.constant 0 : index
    %106 = vector.load %arg11[%c0_42, %c0_43] : memref<1x64xf32, #tpu.memory_space<vmem>>, vector<1x64xf32>
    %107 = vector.broadcast %63 : vector<20x1xf32> to vector<20x20xf32>
    %108 = arith.mulf %107, %3 : vector<20x20xf32>
    %cst_44 = arith.constant dense<0.000000e+00> : vector<20xf32>
    %109 = vector.multi_reduction <add>, %108, %cst_44 [0] : vector<20x20xf32> to vector<20xf32>
    %110 = vector.shape_cast %109 : vector<20xf32> to vector<1x20xf32>
    %111 = arith.truncf %63 : vector<20x1xf32> to vector<20x1xbf16>
    %cst_45 = arith.constant dense<0.000000e+00> : vector<20x1xf32>
    %112 = tpu.matmul %0, %111, %cst_45 {dimension_numbers = #tpu.dot_dimension_numbers<[1], [0], [0], [1], [0, 0, 1, 1], [], []>} : vector<20x20xbf16>, vector<20x1xbf16>, vector<20x1xf32> -> vector<20x1xf32>
    %cst_46 = arith.constant 0.000000e+00 : f32
    %113 = vector.broadcast %cst_46 : f32 to vector<20x1xf32>
    %114 = arith.cmpf ogt, %112, %113 : vector<20x1xf32>
    %115 = math.rsqrt %112 : vector<20x1xf32>
    %cst_47 = arith.constant 0.000000e+00 : f32
    %116 = vector.broadcast %cst_47 : f32 to vector<20x1xf32>
    %117 = arith.select %114, %115, %116 : vector<20x1xi1>, vector<20x1xf32>
    %118 = vector.broadcast %117 : vector<20x1xf32> to vector<20x64xf32>
    %119 = arith.mulf %118, %68 : vector<20x64xf32>
    %cst_48 = arith.constant dense<0.000000e+00> : vector<20x64xf32>
    %120 = tpu.matmul %119, %104, %cst_48 {dimension_numbers = #tpu.dot_dimension_numbers<[1], [0], [0], [1], [0, 0, 1, 1], [], []>} : vector<20x64xf32>, vector<64x64xf32>, vector<20x64xf32> -> vector<20x64xf32>
    %121 = arith.truncf %120 : vector<20x64xf32> to vector<20x64xbf16>
    %cst_49 = arith.constant dense<0.000000e+00> : vector<20x64xf32>
    %122 = tpu.matmul %0, %121, %cst_49 {dimension_numbers = #tpu.dot_dimension_numbers<[1], [0], [0], [1], [0, 0, 1, 1], [], []>} : vector<20x20xbf16>, vector<20x64xbf16>, vector<20x64xf32> -> vector<20x64xf32>
    %123 = vector.broadcast %117 : vector<20x1xf32> to vector<20x64xf32>
    %124 = arith.mulf %123, %122 : vector<20x64xf32>
    %125 = vector.broadcast %105 : vector<1x64xf32> to vector<20x64xf32>
    %126 = arith.addf %124, %125 : vector<20x64xf32>
    %cst_50 = arith.constant 0.000000e+00 : f32
    %127 = vector.broadcast %cst_50 : f32 to vector<20x64xf32>
    %128 = arith.maximumf %126, %127 : vector<20x64xf32>
    %129 = vector.broadcast %63 : vector<20x1xf32> to vector<20x64xf32>
    %130 = arith.mulf %128, %129 : vector<20x64xf32>
    %131 = vector.broadcast %106 : vector<1x64xf32> to vector<20x64xf32>
    %132 = arith.mulf %130, %131 : vector<20x64xf32>
    %cst_51 = arith.constant dense<0.000000e+00> : vector<20xf32>
    %133 = vector.multi_reduction <add>, %132, %cst_51 [1] : vector<20x64xf32> to vector<20xf32>
    %134 = vector.shape_cast %133 : vector<20xf32> to vector<20x1xf32>
    %135 = vector.broadcast %134 : vector<20x1xf32> to vector<20x20xf32>
    %136 = arith.mulf %135, %3 : vector<20x20xf32>
    %cst_52 = arith.constant dense<0.000000e+00> : vector<20xf32>
    %137 = vector.multi_reduction <add>, %136, %cst_52 [0] : vector<20x20xf32> to vector<20xf32>
    %138 = vector.shape_cast %137 : vector<20xf32> to vector<1x20xf32>
    %139 = vector.broadcast %138 : vector<1x20xf32> to vector<20x20xf32>
    %140 = vector.broadcast %134 : vector<20x1xf32> to vector<20x20xf32>
    %141 = arith.cmpf ogt, %139, %140 : vector<20x20xf32>
    %142 = arith.extui %141 : vector<20x20xi1> to vector<20x20xi32>
    %143 = arith.sitofp %142 : vector<20x20xi32> to vector<20x20xf32>
    %144 = vector.broadcast %138 : vector<1x20xf32> to vector<20x20xf32>
    %145 = vector.broadcast %134 : vector<20x1xf32> to vector<20x20xf32>
    %146 = arith.cmpf oeq, %144, %145 : vector<20x20xf32>
    %147 = arith.extui %146 : vector<20x20xi1> to vector<20x20xi32>
    %148 = arith.sitofp %147 : vector<20x20xi32> to vector<20x20xf32>
    %149 = vector.broadcast %110 : vector<1x20xf32> to vector<20x20xf32>
    %150 = arith.mulf %1, %149 : vector<20x20xf32>
    %151 = arith.mulf %148, %2 : vector<20x20xf32>
    %152 = arith.addf %143, %151 : vector<20x20xf32>
    %153 = arith.mulf %150, %152 : vector<20x20xf32>
    %cst_53 = arith.constant dense<0.000000e+00> : vector<20xf32>
    %154 = vector.multi_reduction <add>, %153, %cst_53 [1] : vector<20x20xf32> to vector<20xf32>
    %155 = vector.shape_cast %154 : vector<20xf32> to vector<20x1xf32>
    %cst_54 = arith.constant 7.000000e+00 : f32
    %156 = vector.broadcast %cst_54 : f32 to vector<20x1xf32>
    %157 = arith.cmpf olt, %155, %156 : vector<20x1xf32>
    %158 = arith.extui %157 : vector<20x1xi1> to vector<20x1xi32>
    %159 = arith.sitofp %158 : vector<20x1xi32> to vector<20x1xf32>
    %160 = arith.mulf %63, %159 : vector<20x1xf32>
    %161 = math.tanh %134 : vector<20x1xf32>
    %162 = vector.broadcast %161 : vector<20x1xf32> to vector<20x64xf32>
    %163 = arith.mulf %130, %162 : vector<20x64xf32>
    %164 = vector.broadcast %160 : vector<20x1xf32> to vector<20x64xf32>
    %165 = arith.mulf %163, %164 : vector<20x64xf32>
    %166 = vector.extract_strided_slice %4 {offsets = [0, 0], sizes = [20, 1], strides = [1, 1]} : vector<20x2xf32> to vector<20x1xf32>
    %167 = arith.mulf %166, %160 : vector<20x1xf32>
    %cst_55 = arith.constant 1.000000e+00 : f32
    %168 = vector.broadcast %cst_55 : f32 to vector<20x1xf32>
    %169 = arith.subf %168, %167 : vector<20x1xf32>
    %cst_56 = arith.constant -1.000000e+30 : f32
    %170 = vector.broadcast %cst_56 : f32 to vector<20x1xf32>
    %171 = arith.mulf %169, %170 : vector<20x1xf32>
    %172 = vector.broadcast %171 : vector<20x1xf32> to vector<20x64xf32>
    %173 = arith.addf %165, %172 : vector<20x64xf32>
    %cst_57 = arith.constant dense<0xFF800000> : vector<64xf32>
    %174 = vector.multi_reduction <maximumf>, %173, %cst_57 [0] : vector<20x64xf32> to vector<64xf32>
    %175 = vector.shape_cast %174 : vector<64xf32> to vector<1x64xf32>
    %176 = vector.broadcast %166 : vector<20x1xf32> to vector<20x64xf32>
    %177 = arith.mulf %165, %176 : vector<20x64xf32>
    %cst_58 = arith.constant dense<0.000000e+00> : vector<64xf32>
    %178 = vector.multi_reduction <add>, %177, %cst_58 [0] : vector<20x64xf32> to vector<64xf32>
    %179 = vector.shape_cast %178 : vector<64xf32> to vector<1x64xf32>
    %cst_59 = arith.constant 0.142857149 : f32
    %180 = vector.broadcast %cst_59 : f32 to vector<1x64xf32>
    %181 = arith.mulf %179, %180 : vector<1x64xf32>
    %182 = tpu.concatenate %175, %181 in 1 : vector<1x64xf32>, vector<1x64xf32> -> vector<1x128xf32>
    %183 = vector.extract_strided_slice %4 {offsets = [0, 1], sizes = [20, 1], strides = [1, 1]} : vector<20x2xf32> to vector<20x1xf32>
    %184 = arith.mulf %183, %160 : vector<20x1xf32>
    %cst_60 = arith.constant 1.000000e+00 : f32
    %185 = vector.broadcast %cst_60 : f32 to vector<20x1xf32>
    %186 = arith.subf %185, %184 : vector<20x1xf32>
    %cst_61 = arith.constant -1.000000e+30 : f32
    %187 = vector.broadcast %cst_61 : f32 to vector<20x1xf32>
    %188 = arith.mulf %186, %187 : vector<20x1xf32>
    %189 = vector.broadcast %188 : vector<20x1xf32> to vector<20x64xf32>
    %190 = arith.addf %165, %189 : vector<20x64xf32>
    %cst_62 = arith.constant dense<0xFF800000> : vector<64xf32>
    %191 = vector.multi_reduction <maximumf>, %190, %cst_62 [0] : vector<20x64xf32> to vector<64xf32>
    %192 = vector.shape_cast %191 : vector<64xf32> to vector<1x64xf32>
    %193 = vector.broadcast %183 : vector<20x1xf32> to vector<20x64xf32>
    %194 = arith.mulf %165, %193 : vector<20x64xf32>
    %cst_63 = arith.constant dense<0.000000e+00> : vector<64xf32>
    %195 = vector.multi_reduction <add>, %194, %cst_63 [0] : vector<20x64xf32> to vector<64xf32>
    %196 = vector.shape_cast %195 : vector<64xf32> to vector<1x64xf32>
    %cst_64 = arith.constant 0.142857149 : f32
    %197 = vector.broadcast %cst_64 : f32 to vector<1x64xf32>
    %198 = arith.mulf %196, %197 : vector<1x64xf32>
    %199 = tpu.concatenate %192, %198 in 1 : vector<1x64xf32>, vector<1x64xf32> -> vector<1x128xf32>
    %200 = tpu.concatenate %182, %199 in 0 : vector<1x128xf32>, vector<1x128xf32> -> vector<2x128xf32>
    %c0_65 = arith.constant 0 : index
    %c0_66 = arith.constant 0 : index
    %201 = vector.load %arg12[%c0_65, %c0_66] : memref<64x64xf32, #tpu.memory_space<vmem>>, vector<64x64xf32>
    %c0_67 = arith.constant 0 : index
    %c0_68 = arith.constant 0 : index
    %202 = vector.load %arg13[%c0_67, %c0_68] : memref<1x64xf32, #tpu.memory_space<vmem>>, vector<1x64xf32>
    %c0_69 = arith.constant 0 : index
    %c0_70 = arith.constant 0 : index
    %203 = vector.load %arg14[%c0_69, %c0_70] : memref<1x64xf32, #tpu.memory_space<vmem>>, vector<1x64xf32>
    %204 = vector.broadcast %160 : vector<20x1xf32> to vector<20x20xf32>
    %205 = arith.mulf %204, %3 : vector<20x20xf32>
    %cst_71 = arith.constant dense<0.000000e+00> : vector<20xf32>
    %206 = vector.multi_reduction <add>, %205, %cst_71 [0] : vector<20x20xf32> to vector<20xf32>
    %207 = vector.shape_cast %206 : vector<20xf32> to vector<1x20xf32>
    %208 = arith.truncf %160 : vector<20x1xf32> to vector<20x1xbf16>
    %cst_72 = arith.constant dense<0.000000e+00> : vector<20x1xf32>
    %209 = tpu.matmul %0, %208, %cst_72 {dimension_numbers = #tpu.dot_dimension_numbers<[1], [0], [0], [1], [0, 0, 1, 1], [], []>} : vector<20x20xbf16>, vector<20x1xbf16>, vector<20x1xf32> -> vector<20x1xf32>
    %cst_73 = arith.constant 0.000000e+00 : f32
    %210 = vector.broadcast %cst_73 : f32 to vector<20x1xf32>
    %211 = arith.cmpf ogt, %209, %210 : vector<20x1xf32>
    %212 = math.rsqrt %209 : vector<20x1xf32>
    %cst_74 = arith.constant 0.000000e+00 : f32
    %213 = vector.broadcast %cst_74 : f32 to vector<20x1xf32>
    %214 = arith.select %211, %212, %213 : vector<20x1xi1>, vector<20x1xf32>
    %215 = vector.broadcast %214 : vector<20x1xf32> to vector<20x64xf32>
    %216 = arith.mulf %215, %165 : vector<20x64xf32>
    %cst_75 = arith.constant dense<0.000000e+00> : vector<20x64xf32>
    %217 = tpu.matmul %216, %201, %cst_75 {dimension_numbers = #tpu.dot_dimension_numbers<[1], [0], [0], [1], [0, 0, 1, 1], [], []>} : vector<20x64xf32>, vector<64x64xf32>, vector<20x64xf32> -> vector<20x64xf32>
    %218 = arith.truncf %217 : vector<20x64xf32> to vector<20x64xbf16>
    %cst_76 = arith.constant dense<0.000000e+00> : vector<20x64xf32>
    %219 = tpu.matmul %0, %218, %cst_76 {dimension_numbers = #tpu.dot_dimension_numbers<[1], [0], [0], [1], [0, 0, 1, 1], [], []>} : vector<20x20xbf16>, vector<20x64xbf16>, vector<20x64xf32> -> vector<20x64xf32>
    %220 = vector.broadcast %214 : vector<20x1xf32> to vector<20x64xf32>
    %221 = arith.mulf %220, %219 : vector<20x64xf32>
    %222 = vector.broadcast %202 : vector<1x64xf32> to vector<20x64xf32>
    %223 = arith.addf %221, %222 : vector<20x64xf32>
    %cst_77 = arith.constant 0.000000e+00 : f32
    %224 = vector.broadcast %cst_77 : f32 to vector<20x64xf32>
    %225 = arith.maximumf %223, %224 : vector<20x64xf32>
    %226 = vector.broadcast %160 : vector<20x1xf32> to vector<20x64xf32>
    %227 = arith.mulf %225, %226 : vector<20x64xf32>
    %228 = vector.broadcast %203 : vector<1x64xf32> to vector<20x64xf32>
    %229 = arith.mulf %227, %228 : vector<20x64xf32>
    %cst_78 = arith.constant dense<0.000000e+00> : vector<20xf32>
    %230 = vector.multi_reduction <add>, %229, %cst_78 [1] : vector<20x64xf32> to vector<20xf32>
    %231 = vector.shape_cast %230 : vector<20xf32> to vector<20x1xf32>
    %232 = vector.broadcast %231 : vector<20x1xf32> to vector<20x20xf32>
    %233 = arith.mulf %232, %3 : vector<20x20xf32>
    %cst_79 = arith.constant dense<0.000000e+00> : vector<20xf32>
    %234 = vector.multi_reduction <add>, %233, %cst_79 [0] : vector<20x20xf32> to vector<20xf32>
    %235 = vector.shape_cast %234 : vector<20xf32> to vector<1x20xf32>
    %236 = vector.broadcast %235 : vector<1x20xf32> to vector<20x20xf32>
    %237 = vector.broadcast %231 : vector<20x1xf32> to vector<20x20xf32>
    %238 = arith.cmpf ogt, %236, %237 : vector<20x20xf32>
    %239 = arith.extui %238 : vector<20x20xi1> to vector<20x20xi32>
    %240 = arith.sitofp %239 : vector<20x20xi32> to vector<20x20xf32>
    %241 = vector.broadcast %235 : vector<1x20xf32> to vector<20x20xf32>
    %242 = vector.broadcast %231 : vector<20x1xf32> to vector<20x20xf32>
    %243 = arith.cmpf oeq, %241, %242 : vector<20x20xf32>
    %244 = arith.extui %243 : vector<20x20xi1> to vector<20x20xi32>
    %245 = arith.sitofp %244 : vector<20x20xi32> to vector<20x20xf32>
    %246 = vector.broadcast %207 : vector<1x20xf32> to vector<20x20xf32>
    %247 = arith.mulf %1, %246 : vector<20x20xf32>
    %248 = arith.mulf %245, %2 : vector<20x20xf32>
    %249 = arith.addf %240, %248 : vector<20x20xf32>
    %250 = arith.mulf %247, %249 : vector<20x20xf32>
    %cst_80 = arith.constant dense<0.000000e+00> : vector<20xf32>
    %251 = vector.multi_reduction <add>, %250, %cst_80 [1] : vector<20x20xf32> to vector<20xf32>
    %252 = vector.shape_cast %251 : vector<20xf32> to vector<20x1xf32>
    %cst_81 = arith.constant 6.000000e+00 : f32
    %253 = vector.broadcast %cst_81 : f32 to vector<20x1xf32>
    %254 = arith.cmpf olt, %252, %253 : vector<20x1xf32>
    %255 = arith.extui %254 : vector<20x1xi1> to vector<20x1xi32>
    %256 = arith.sitofp %255 : vector<20x1xi32> to vector<20x1xf32>
    %257 = arith.mulf %160, %256 : vector<20x1xf32>
    %258 = math.tanh %231 : vector<20x1xf32>
    %259 = vector.broadcast %258 : vector<20x1xf32> to vector<20x64xf32>
    %260 = arith.mulf %227, %259 : vector<20x64xf32>
    %261 = vector.broadcast %257 : vector<20x1xf32> to vector<20x64xf32>
    %262 = arith.mulf %260, %261 : vector<20x64xf32>
    %263 = vector.extract_strided_slice %4 {offsets = [0, 0], sizes = [20, 1], strides = [1, 1]} : vector<20x2xf32> to vector<20x1xf32>
    %264 = arith.mulf %263, %257 : vector<20x1xf32>
    %cst_82 = arith.constant 1.000000e+00 : f32
    %265 = vector.broadcast %cst_82 : f32 to vector<20x1xf32>
    %266 = arith.subf %265, %264 : vector<20x1xf32>
    %cst_83 = arith.constant -1.000000e+30 : f32
    %267 = vector.broadcast %cst_83 : f32 to vector<20x1xf32>
    %268 = arith.mulf %266, %267 : vector<20x1xf32>
    %269 = vector.broadcast %268 : vector<20x1xf32> to vector<20x64xf32>
    %270 = arith.addf %262, %269 : vector<20x64xf32>
    %cst_84 = arith.constant dense<0xFF800000> : vector<64xf32>
    %271 = vector.multi_reduction <maximumf>, %270, %cst_84 [0] : vector<20x64xf32> to vector<64xf32>
    %272 = vector.shape_cast %271 : vector<64xf32> to vector<1x64xf32>
    %273 = vector.broadcast %263 : vector<20x1xf32> to vector<20x64xf32>
    %274 = arith.mulf %262, %273 : vector<20x64xf32>
    %cst_85 = arith.constant dense<0.000000e+00> : vector<64xf32>
    %275 = vector.multi_reduction <add>, %274, %cst_85 [0] : vector<20x64xf32> to vector<64xf32>
    %276 = vector.shape_cast %275 : vector<64xf32> to vector<1x64xf32>
    %cst_86 = arith.constant 0.166666672 : f32
    %277 = vector.broadcast %cst_86 : f32 to vector<1x64xf32>
    %278 = arith.mulf %276, %277 : vector<1x64xf32>
    %279 = tpu.concatenate %272, %278 in 1 : vector<1x64xf32>, vector<1x64xf32> -> vector<1x128xf32>
    %280 = vector.extract_strided_slice %4 {offsets = [0, 1], sizes = [20, 1], strides = [1, 1]} : vector<20x2xf32> to vector<20x1xf32>
    %281 = arith.mulf %280, %257 : vector<20x1xf32>
    %cst_87 = arith.constant 1.000000e+00 : f32
    %282 = vector.broadcast %cst_87 : f32 to vector<20x1xf32>
    %283 = arith.subf %282, %281 : vector<20x1xf32>
    %cst_88 = arith.constant -1.000000e+30 : f32
    %284 = vector.broadcast %cst_88 : f32 to vector<20x1xf32>
    %285 = arith.mulf %283, %284 : vector<20x1xf32>
    %286 = vector.broadcast %285 : vector<20x1xf32> to vector<20x64xf32>
    %287 = arith.addf %262, %286 : vector<20x64xf32>
    %cst_89 = arith.constant dense<0xFF800000> : vector<64xf32>
    %288 = vector.multi_reduction <maximumf>, %287, %cst_89 [0] : vector<20x64xf32> to vector<64xf32>
    %289 = vector.shape_cast %288 : vector<64xf32> to vector<1x64xf32>
    %290 = vector.broadcast %280 : vector<20x1xf32> to vector<20x64xf32>
    %291 = arith.mulf %262, %290 : vector<20x64xf32>
    %cst_90 = arith.constant dense<0.000000e+00> : vector<64xf32>
    %292 = vector.multi_reduction <add>, %291, %cst_90 [0] : vector<20x64xf32> to vector<64xf32>
    %293 = vector.shape_cast %292 : vector<64xf32> to vector<1x64xf32>
    %cst_91 = arith.constant 0.166666672 : f32
    %294 = vector.broadcast %cst_91 : f32 to vector<1x64xf32>
    %295 = arith.mulf %293, %294 : vector<1x64xf32>
    %296 = tpu.concatenate %289, %295 in 1 : vector<1x64xf32>, vector<1x64xf32> -> vector<1x128xf32>
    %297 = tpu.concatenate %279, %296 in 0 : vector<1x128xf32>, vector<1x128xf32> -> vector<2x128xf32>
    %298 = arith.addf %103, %200 : vector<2x128xf32>
    %299 = arith.addf %298, %297 : vector<2x128xf32>
    %c0_92 = arith.constant 0 : index
    %c0_93 = arith.constant 0 : index
    %300 = vector.load %arg15[%c0_92, %c0_93] : memref<128x64xf32, #tpu.memory_space<vmem>>, vector<128x64xf32>
    %cst_94 = arith.constant dense<0.000000e+00> : vector<2x64xf32>
    %301 = tpu.matmul %299, %300, %cst_94 {dimension_numbers = #tpu.dot_dimension_numbers<[1], [0], [0], [1], [0, 0, 1, 1], [], []>} : vector<2x128xf32>, vector<128x64xf32>, vector<2x64xf32> -> vector<2x64xf32>
    %c0_95 = arith.constant 0 : index
    %c0_96 = arith.constant 0 : index
    %302 = vector.load %arg16[%c0_95, %c0_96] : memref<1x64xf32, #tpu.memory_space<vmem>>, vector<1x64xf32>
    %303 = vector.broadcast %302 : vector<1x64xf32> to vector<2x64xf32>
    %304 = arith.addf %301, %303 : vector<2x64xf32>
    %cst_97 = arith.constant 0.000000e+00 : f32
    %305 = vector.broadcast %cst_97 : f32 to vector<2x64xf32>
    %306 = arith.maximumf %304, %305 : vector<2x64xf32>
    %c0_98 = arith.constant 0 : index
    %c0_99 = arith.constant 0 : index
    %307 = vector.load %arg17[%c0_98, %c0_99] : memref<64x2xf32, #tpu.memory_space<vmem>>, vector<64x2xf32>
    %cst_100 = arith.constant dense<0.000000e+00> : vector<2x2xf32>
    %308 = tpu.matmul %306, %307, %cst_100 {dimension_numbers = #tpu.dot_dimension_numbers<[1], [0], [0], [1], [0, 0, 1, 1], [], []>} : vector<2x64xf32>, vector<64x2xf32>, vector<2x2xf32> -> vector<2x2xf32>
    %c0_101 = arith.constant 0 : index
    %c0_102 = arith.constant 0 : index
    %309 = vector.load %arg18[%c0_101, %c0_102] : memref<1x2xf32, #tpu.memory_space<vmem>>, vector<1x2xf32>
    %310 = vector.broadcast %309 : vector<1x2xf32> to vector<2x2xf32>
    %311 = arith.addf %308, %310 : vector<2x2xf32>
    %c0_103 = arith.constant 0 : index
    %c0_104 = arith.constant 0 : index
    %312 = vector.load %arg19[%c0_103, %c0_104] : memref<2x2xf32, #tpu.memory_space<vmem>>, vector<2x2xf32>
    tpu.vector_store %arg19[%c0_103, %c0_104], %311 {strides = array<i32>} : memref<2x2xf32, #tpu.memory_space<vmem>>, vector<2x2xf32>,
    return
  }
}

</mosaic_0001>

<llo_original>
// kernel: gnn_forward.1
$region0: #{gnn_forward.1}
  #allocation0 [shape = 'u32[]', space=smem, size = 0x4, offset = 0x4, fixed_abs, tag = 'smem constant byte address 0x4 - core index']
  #allocation1 [shape = 'u32[72,128]{1,0:T(1,128)}', space=vmem, size = 0x9000, scoped, tag = 'internal scratch']
  %s0 = inlined_call_operand.vmem [shape: bf16[20,20], index: 0, kind: input, shape index: {}]
  %s1 = inlined_call_operand.vmem [shape: f32[20,4], index: 1, kind: input, shape index: {}]
  %s2 = inlined_call_operand.vmem [shape: f32[20,20], index: 2, kind: input, shape index: {}]
  %s3 = inlined_call_operand.vmem [shape: f32[20,20], index: 3, kind: input, shape index: {}]
  %s4 = inlined_call_operand.vmem [shape: f32[20,20], index: 4, kind: input, shape index: {}]
  %s5 = inlined_call_operand.vmem [shape: f32[20,2], index: 5, kind: input, shape index: {}]
  %s6 = inlined_call_operand.vmem [shape: f32[4,64], index: 6, kind: input, shape index: {}]
  %s7 = inlined_call_operand.vmem [shape: f32[1,64], index: 7, kind: input, shape index: {}]
  %s8 = inlined_call_operand.vmem [shape: f32[1,64], index: 8, kind: input, shape index: {}]
  %s9 = inlined_call_operand.vmem [shape: f32[64,64], index: 9, kind: input, shape index: {}]
  %s10 = inlined_call_operand.vmem [shape: f32[1,64], index: 10, kind: input, shape index: {}]
  %s11 = inlined_call_operand.vmem [shape: f32[1,64], index: 11, kind: input, shape index: {}]
  %s12 = inlined_call_operand.vmem [shape: f32[64,64], index: 12, kind: input, shape index: {}]
  %s13 = inlined_call_operand.vmem [shape: f32[1,64], index: 13, kind: input, shape index: {}]
  %s14 = inlined_call_operand.vmem [shape: f32[1,64], index: 14, kind: input, shape index: {}]
  %s15 = inlined_call_operand.vmem [shape: f32[128,64], index: 15, kind: input, shape index: {}]
  %s16 = inlined_call_operand.vmem [shape: f32[1,64], index: 16, kind: input, shape index: {}]
  %s17 = inlined_call_operand.vmem [shape: f32[64,2], index: 17, kind: input, shape index: {}]
  %s18 = inlined_call_operand.vmem [shape: f32[1,2], index: 18, kind: input, shape index: {}]
  %s19 = inlined_call_operand.hbm [shape: f32[2,2], index: 19, kind: output, shape index: {}]
  %s20 = sld [smem:[#allocation0]]
  $region86: #{gnn_forward.1} parent=0
    _
  %s22 = ssub.s32 1, %s20
  %s23 = scalar_select 0, %s22, %s20
  $region1: #{gnn_forward.1} parent=0
    #allocation2 [shape = 'u8[1024]{0}', space=vmem, size = 0x400, scoped, tag = 'output window, operand 0, single buffered']
    #allocation3 [shape = 's32[1]{0}', space=sflag, size = 0x4, scoped, tag = 'scoped memory for gnn_forward.1']
    %24 = vsyncpa [#allocation3], 0
    // Predicated region
    $region2: #{gnn_forward.1} parent=1 // pred_check
      _
    $region3: #{gnn_forward.1} parent=1 // pred_check_branch
      %26 = sbr.rel (0) target = $region5
    $region4: #{gnn_forward.1} parent=1 // pred_region
      _
    $region5: #{gnn_forward.1} parent=1 // pred_fallthru
      _
    // Predicated region
    $region6: #{gnn_forward.1} parent=1 // pred_check
      _
    $region7: #{gnn_forward.1} parent=1 // pred_check_branch
      %28 = sbr.rel (0) target = $region9
    $region8: #{gnn_forward.1} parent=1 // pred_region
      _
    $region9: #{gnn_forward.1} parent=1 // pred_fallthru
      _
    // Predicated region
    $region10: #{gnn_forward.1} parent=1 // pred_check
      _
    $region11: #{gnn_forward.1} parent=1 // pred_check_branch
      %30 = sbr.rel (0) target = $region13
    $region12: #{gnn_forward.1} parent=1 // pred_region
      _
    $region13: #{gnn_forward.1} parent=1 // pred_fallthru
      _
    // Predicated region
    $region14: #{gnn_forward.1} parent=1 // pred_check
      _
    $region15: #{gnn_forward.1} parent=1 // pred_check_branch
      %32 = sbr.rel (0) target = $region17
    $region16: #{gnn_forward.1} parent=1 // pred_region
      _
    $region17: #{gnn_forward.1} parent=1 // pred_fallthru
      _
    // Predicated region
    $region18: #{gnn_forward.1} parent=1 // pred_check
      _
    $region19: #{gnn_forward.1} parent=1 // pred_check_branch
      %34 = sbr.rel (0) target = $region21
    $region20: #{gnn_forward.1} parent=1 // pred_region
      _
    $region21: #{gnn_forward.1} parent=1 // pred_fallthru
      _
    // Predicated region
    $region22: #{gnn_forward.1} parent=1 // pred_check
      _
    $region23: #{gnn_forward.1} parent=1 // pred_check_branch
      %36 = sbr.rel (0) target = $region25
    $region24: #{gnn_forward.1} parent=1 // pred_region
      _
    $region25: #{gnn_forward.1} parent=1 // pred_fallthru
      _
    // Predicated region
    $region26: #{gnn_forward.1} parent=1 // pred_check
      _
    $region27: #{gnn_forward.1} parent=1 // pred_check_branch
      %38 = sbr.rel (0) target = $region29
    $region28: #{gnn_forward.1} parent=1 // pred_region
      _
    $region29: #{gnn_forward.1} parent=1 // pred_fallthru
      _
    // Predicated region
    $region30: #{gnn_forward.1} parent=1 // pred_check
      _
    $region31: #{gnn_forward.1} parent=1 // pred_check_branch
      %40 = sbr.rel (0) target = $region33
    $region32: #{gnn_forward.1} parent=1 // pred_region
      _
    $region33: #{gnn_forward.1} parent=1 // pred_fallthru
      _
    // Predicated region
    $region34: #{gnn_forward.1} parent=1 // pred_check
      _
    $region35: #{gnn_forward.1} parent=1 // pred_check_branch
      %42 = sbr.rel (0) target = $region37
    $region36: #{gnn_forward.1} parent=1 // pred_region
      _
    $region37: #{gnn_forward.1} parent=1 // pred_fallthru
      _
    // Predicated region
    $region38: #{gnn_forward.1} parent=1 // pred_check
      _
    $region39: #{gnn_forward.1} parent=1 // pred_check_branch
      %44 = sbr.rel (0) target = $region41
    $region40: #{gnn_forward.1} parent=1 // pred_region
      _
    $region41: #{gnn_forward.1} parent=1 // pred_fallthru
      _
    // Predicated region
    $region42: #{gnn_forward.1} parent=1 // pred_check
      _
    $region43: #{gnn_forward.1} parent=1 // pred_check_branch
      %46 = sbr.rel (0) target = $region45
    $region44: #{gnn_forward.1} parent=1 // pred_region
      _
    $region45: #{gnn_forward.1} parent=1 // pred_fallthru
      _
    // Predicated region
    $region46: #{gnn_forward.1} parent=1 // pred_check
      _
    $region47: #{gnn_forward.1} parent=1 // pred_check_branch
      %48 = sbr.rel (0) target = $region49
    $region48: #{gnn_forward.1} parent=1 // pred_region
      _
    $region49: #{gnn_forward.1} parent=1 // pred_fallthru
      _
    // Predicated region
    $region50: #{gnn_forward.1} parent=1 // pred_check
      _
    $region51: #{gnn_forward.1} parent=1 // pred_check_branch
      %50 = sbr.rel (0) target = $region53
    $region52: #{gnn_forward.1} parent=1 // pred_region
      _
    $region53: #{gnn_forward.1} parent=1 // pred_fallthru
      _
    // Predicated region
    $region54: #{gnn_forward.1} parent=1 // pred_check
      _
    $region55: #{gnn_forward.1} parent=1 // pred_check_branch
      %52 = sbr.rel (0) target = $region57
    $region56: #{gnn_forward.1} parent=1 // pred_region
      _
    $region57: #{gnn_forward.1} parent=1 // pred_fallthru
      _
    // Predicated region
    $region58: #{gnn_forward.1} parent=1 // pred_check
      _
    $region59: #{gnn_forward.1} parent=1 // pred_check_branch
      %54 = sbr.rel (0) target = $region61
    $region60: #{gnn_forward.1} parent=1 // pred_region
      _
    $region61: #{gnn_forward.1} parent=1 // pred_fallthru
      _
    // Predicated region
    $region62: #{gnn_forward.1} parent=1 // pred_check
      _
    $region63: #{gnn_forward.1} parent=1 // pred_check_branch
      %56 = sbr.rel (0) target = $region65
    $region64: #{gnn_forward.1} parent=1 // pred_region
      _
    $region65: #{gnn_forward.1} parent=1 // pred_fallthru
      _
    // Predicated region
    $region66: #{gnn_forward.1} parent=1 // pred_check
      _
    $region67: #{gnn_forward.1} parent=1 // pred_check_branch
      %58 = sbr.rel (0) target = $region69
    $region68: #{gnn_forward.1} parent=1 // pred_region
      _
    $region69: #{gnn_forward.1} parent=1 // pred_fallthru
      _
    // Predicated region
    $region70: #{gnn_forward.1} parent=1 // pred_check
      _
    $region71: #{gnn_forward.1} parent=1 // pred_check_branch
      %60 = sbr.rel (0) target = $region73
    $region72: #{gnn_forward.1} parent=1 // pred_region
      _
    $region73: #{gnn_forward.1} parent=1 // pred_fallthru
      _
    // Predicated region
    $region74: #{gnn_forward.1} parent=1 // pred_check
      _
    $region75: #{gnn_forward.1} parent=1 // pred_check_branch
      %62 = sbr.rel (0) target = $region77
    $region76: #{gnn_forward.1} parent=1 // pred_region
      _
    $region77: #{gnn_forward.1} parent=1 // pred_fallthru
      _
    %v65 = vld [vmem:[%s0] sm:$0xf]
    %v66 = vld [vmem:[%s0 + $0x4] sm:$0xf]
    %v67 = vld [vmem:[%s0 + $0x8] sm:$0x3]
    %v68 = vld [vmem:[%s2] sm:$0xff]
    %v69 = vld [vmem:[%s2 + $0x8] sm:$0xff]
    %v70 = vld [vmem:[%s2 + $0x10] sm:$0xf]
    %v71 = vld [vmem:[%s3] sm:$0xff]
    %v72 = vld [vmem:[%s3 + $0x8] sm:$0xff]
    %v73 = vld [vmem:[%s3 + $0x10] sm:$0xf]
    %v74 = vld [vmem:[%s4] sm:$0xff]
    %v75 = vld [vmem:[%s4 + $0x8] sm:$0xff]
    %v76 = vld [vmem:[%s4 + $0x10] sm:$0xf]
    %v77 = vld [vmem:[%s5] sm:$0xff]
    %v78 = vld [vmem:[%s5 + $0x8] sm:$0xff]
    %v79 = vld [vmem:[%s5 + $0x10] sm:$0xf]
    %v80 = vld [vmem:[%s1] sm:$0xff]
    %v81 = vld [vmem:[%s1 + $0x8] sm:$0xff]
    %v82 = vld [vmem:[%s1 + $0x10] sm:$0xf]
    %v83 = vld [vmem:[%s6] sm:$0xf]
    %v84 = vld [vmem:[%s7] sm:$0x1]
    %v85 = vld [vmem:[%s8] sm:$0x1]
    %vm86 = vcmask 162816
    %v87 = vsel %vm86, %v74, 0.0
    %v88 = vsel %vm86, %v75, 0.0
    %v89 = vadd.f32 %v87, %v88
    %vm90 = vcmask 158720
    %v91 = vsel %vm90, %v76, 0.0
    %v92 = vadd.f32 %v89, %v91
    %v93 = vrot.slane %v92, 4
    %v94 = vadd.f32 %v92, %v93
    %v95 = vrot.slane %v94, 2
    %v96 = vadd.f32 %v94, %v95
    %v97 = vrot.slane %v96, 1
    %v98 = vadd.f32 %v96, %v97
    %v102 = vunpack.c.l.b16 %v65
    %v103 = vunpack.c.l.b16 %v66
    %v104 = vunpack.c.l.b16 %v67
    %v105 = vpack.c.b16 %v103, %v102
    %v106 = vpack.c.b16 %v104, %v104
    %v108 = vsel %vm86, %v105, 0
    %v111 = vsel %vm86, %v106, 0
    %vm113 = vcmask 1041408
    %v115 = vsel %vm113, 1065369472, 0
    %117 = vmatpush.bf16.msra.mxu0 0
    %118 = vmatpush.bf16.msra.mxu0 0
    %119 = vmatpush.bf16.msra.mxu0 0
    %120 = vmatpush.bf16.msra.mxu0 0
    %121 = vmatpush.bf16.msra.mxu0 0
    %122 = vmatpush.bf16.msra.mxu0 0
    %123 = vmatpush.bf16.msra.mxu0 %v115
    %124 = vmatpush.bf16.msra.mxu0 1065369472
    %125 = vmatmul.bf16.gmra.mxu0 %v108
    %v126 = vpop.f32.mrf.mxu0
    %v127 = vadd.f32 0.0, %v126
    %v128 = vpop.f32.mrf.mxu0
    %v129 = vadd.f32 0.0, %v128
    %130 = vmatmul.bf16.gmra.mxu0 %v111
    %v131 = vpop.f32.mrf.mxu0
    %v132 = vadd.f32 0.0, %v131
    %v133 = vpop.f32.mrf.mxu0
    %134 = vdwg.mxu0
    %vm135 = vcmp.gt.f32.partialorder %v127, 0.0
    %vm136 = vcmp.gt.f32.partialorder %v129, 0.0
    %vm137 = vcmp.gt.f32.partialorder %v132, 0.0
    %v138 = vrsqrt.pop %v127
    %v139 = vmul.f32 %v138, %v127
    %v140 = vmul.f32 %v139, %v138
    %v141 = vmul.f32 0.5, %v140
    %v142 = vsub.f32 1.5, %v141
    %v143 = vmul.f32 %v138, %v142
    %vm144 = vweird.f32 %v127
    %vm145 = vweird.f32 %v138
    %vm146 = vmor %vm144, %vm145
    %v147 = vsel %vm146, %v138, %v143
    %v148 = vrsqrt.pop %v129
    %v149 = vmul.f32 %v148, %v129
    %v150 = vmul.f32 %v149, %v148
    %v151 = vmul.f32 0.5, %v150
    %v152 = vsub.f32 1.5, %v151
    %v153 = vmul.f32 %v148, %v152
    %vm154 = vweird.f32 %v129
    %vm155 = vweird.f32 %v148
    %vm156 = vmor %vm154, %vm155
    %v157 = vsel %vm156, %v148, %v153
    %v158 = vrsqrt.pop %v132
    %v159 = vmul.f32 %v158, %v132
    %v160 = vmul.f32 %v159, %v158
    %v161 = vmul.f32 0.5, %v160
    %v162 = vsub.f32 1.5, %v161
    %v163 = vmul.f32 %v158, %v162
    %vm164 = vweird.f32 %v132
    %vm165 = vweird.f32 %v158
    %vm166 = vmor %vm164, %vm165
    %v167 = vsel %vm166, %v158, %v163
    %v168 = vsel %vm135, %v147, 0.0
    %v169 = vsel %vm136, %v157, 0.0
    %v170 = vsel %vm137, %v167, 0.0
    %172 = vset.pattern.permute.xlu0 0
    %173 = vperm.xlu0 %172, %v168
    %v174 = vpop.permute.xlu0 %173
    %177 = vset.pattern.permute.xlu0 0
    %178 = vperm.xlu0 %177, %v169
    %v179 = vpop.permute.xlu0 %178
    %182 = vset.pattern.permute.xlu0 0
    %183 = vperm.xlu0 %182, %v170
    %v184 = vpop.permute.xlu0 %183
    %v186 = vmul.f32 %v174, %v80
    %v187 = vmul.f32 %v179, %v81
    %v188 = vmul.f32 %v184, %v82
    %vm189 = vcmask 31744
    %v191 = vsel %vm189, %v186, 0
    %v194 = vsel %vm189, %v187, 0
    %v197 = vsel %vm189, %v188, 0
    %vm199 = vcmask 1043456
    %v201 = vsel %vm199, %v83, 0
    %203 = vmatpush.msra.mxu0 0.0
    %204 = vmatpush.msra.mxu0 0.0
    %205 = vmatpush.msra.mxu0 0.0
    %206 = vmatpush.msra.mxu0 0.0
    %207 = vmatpush.msra.mxu0 0.0
    %208 = vmatpush.msra.mxu0 0.0
    %209 = vmatpush.msra.mxu0 0.0
    %210 = vmatpush.msra.mxu0 0.0
    %211 = vmatpush.msra.mxu0 0.0
    %212 = vmatpush.msra.mxu0 0.0
    %213 = vmatpush.msra.mxu0 0.0
    %214 = vmatpush.msra.mxu0 0.0
    %215 = vmatpush.msra.mxu0 0.0
    %216 = vmatpush.msra.mxu0 0.0
    %217 = vmatpush.msra.mxu0 0.0
    %218 = vmatpush.msra.mxu0 %v201
    %219 = vmatmul.f32.gmra.mxu0 %v191
    %v220 = vpop.f32.mrf.mxu0
    %v221 = vadd.f32 0.0, %v220
    %222 = vmatmul.f32.gmra.mxu0 %v194
    %v223 = vpop.f32.mrf.mxu0
    %v224 = vadd.f32 0.0, %v223
    %225 = vmatmul.f32.gmra.mxu0 %v197
    %v226 = vpop.f32.mrf.mxu0
    %v227 = vadd.f32 0.0, %v226
    %228 = vdwg.mxu0
    %v229 = vpack.c.bf16 %v224, %v221
    %v230 = vpack.c.bf16 %v227, %v227
    %v232 = vsel %vm113, %v230, 0
    %234 = vmatpush.bf16.msra.mxu0 0
    %235 = vmatpush.bf16.msra.mxu0 0
    %236 = vmatpush.bf16.msra.mxu0 0
    %237 = vmatpush.bf16.msra.mxu0 0
    %238 = vmatpush.bf16.msra.mxu0 0
    %239 = vmatpush.bf16.msra.mxu0 0
    %240 = vmatpush.bf16.msra.mxu0 %v232
    %241 = vmatpush.bf16.msra.mxu0 %v229
    %242 = vmatmul.bf16.gmra.mxu0 %v108
    %v243 = vpop.f32.mrf.mxu0
    %v244 = vadd.f32 0.0, %v243
    %v245 = vpop.f32.mrf.mxu0
    %v246 = vadd.f32 0.0, %v245
    %247 = vmatmul.bf16.gmra.mxu0 %v111
    %v248 = vpop.f32.mrf.mxu0
    %v249 = vadd.f32 0.0, %v248
    %v250 = vpop.f32.mrf.mxu0
    %251 = vdwg.mxu0
    %v252 = vmul.f32 %v174, %v244
    %v253 = vmul.f32 %v179, %v246
    %v254 = vmul.f32 %v184, %v249
    %v256 = vperm.slane %v84, 0
    %v258 = vadd.f32 %v252, %v256
    %v259 = vadd.f32 %v253, %v256
    %v260 = vadd.f32 %v254, %v256
    %v261 = vmax.f32 %v258, 0.0
    %v262 = vmax.f32 %v259, 0.0
    %v263 = vmax.f32 %v260, 0.0
    %v265 = vperm.slane %v85, 0
    %v267 = vmul.f32 %v261, %v265
    %v268 = vmul.f32 %v262, %v265
    %v269 = vmul.f32 %v263, %v265
    %vm270 = vcmask 523264
    %v271 = vsel %vm270, %v267, 0.0
    %272 = vadd.xlane.f32.xlu0 %v271
    %v273 = vpop.xlane.xlu0 %272
    %v274 = vsel %vm270, %v268, 0.0
    %275 = vadd.xlane.f32.xlu0 %v274
    %v276 = vpop.xlane.xlu0 %275
    %vm277 = vcmask 519168
    %v278 = vsel %vm277, %v269, 0.0
    %279 = vadd.xlane.f32.xlu0 %v278
    %v280 = vpop.xlane.xlu0 %279
    %v281 = vmul.f32 %v273, %v74
    %v282 = vmul.f32 %v276, %v75
    %v283 = vmul.f32 %v280, %v76
    %v284 = vsel %vm86, %v281, 0.0
    %v285 = vsel %vm86, %v282, 0.0
    %v286 = vadd.f32 %v284, %v285
    %v287 = vsel %vm90, %v283, 0.0
    %v288 = vadd.f32 %v286, %v287
    %v289 = vrot.slane %v288, 4
    %v290 = vadd.f32 %v288, %v289
    %v291 = vrot.slane %v290, 2
    %v292 = vadd.f32 %v290, %v291
    %v293 = vrot.slane %v292, 1
    %v294 = vadd.f32 %v292, %v293
    %vm295 = vcmp.gt.f32.partialorder %v294, %v273
    %vm296 = vcmp.gt.f32.partialorder %v294, %v276
    %vm297 = vcmp.gt.f32.partialorder %v294, %v280
    %v298 = vsel %vm295, 1, 0
    %v299 = vsel %vm296, 1, 0
    %v300 = vsel %vm297, 1, 0
    %v301 = vcvt.s32.f32 %v298
    %v302 = vcvt.s32.f32 %v299
    %v303 = vcvt.s32.f32 %v300
    %vm304 = vcmp.eq.f32.partialorder %v294, %v273
    %vm305 = vcmp.eq.f32.partialorder %v294, %v276
    %vm306 = vcmp.eq.f32.partialorder %v294, %v280
    %v307 = vsel %vm304, 1, 0
    %v308 = vsel %vm305, 1, 0
    %v309 = vsel %vm306, 1, 0
    %v310 = vcvt.s32.f32 %v307
    %v311 = vcvt.s32.f32 %v308
    %v312 = vcvt.s32.f32 %v309
    %v313 = vmul.f32 %v68, %v98
    %v314 = vmul.f32 %v69, %v98
    %v315 = vmul.f32 %v70, %v98
    %v316 = vmul.f32 %v310, %v71
    %v317 = vmul.f32 %v311, %v72
    %v318 = vmul.f32 %v312, %v73
    %v319 = vadd.f32 %v301, %v316
    %v320 = vadd.f32 %v302, %v317
    %v321 = vadd.f32 %v303, %v318
    %v322 = vmul.f32 %v313, %v319
    %v323 = vmul.f32 %v314, %v320
    %v324 = vmul.f32 %v315, %v321
    %v325 = vsel %vm86, %v322, 0.0
    %326 = vadd.xlane.f32.xlu0 %v325
    %v327 = vpop.xlane.xlu0 %326
    %v328 = vsel %vm86, %v323, 0.0
    %329 = vadd.xlane.f32.xlu0 %v328
    %v330 = vpop.xlane.xlu0 %329
    %v331 = vsel %vm90, %v324, 0.0
    %332 = vadd.xlane.f32.xlu0 %v331
    %v333 = vpop.xlane.xlu0 %332
    %vm334 = vcmp.lt.f32.partialorder %v327, 8.0
    %vm335 = vcmp.lt.f32.partialorder %v330, 8.0
    %vm336 = vcmp.lt.f32.partialorder %v333, 8.0
    %v337 = vsel %vm334, 1, 0
    %v338 = vsel %vm335, 1, 0
    %v339 = vsel %vm336, 1, 0
    %v340 = vcvt.s32.f32 %v337
    %v341 = vcvt.s32.f32 %v338
    %v342 = vcvt.s32.f32 %v339
    %v343 = vtanh.pop %v273
    %v344 = vtanh.pop %v276
    %v345 = vtanh.pop %v280
    %v346 = vmul.f32 %v261, %v343
    %v347 = vmul.f32 %v262, %v344
    %v348 = vmul.f32 %v263, %v345
    %v349 = vmul.f32 %v346, %v340
    %v350 = vmul.f32 %v347, %v341
    %v351 = vmul.f32 %v348, %v342
    %v352 = vmul.f32 %v77, %v340
    %v353 = vmul.f32 %v78, %v341
    %v354 = vmul.f32 %v79, %v342
    %v355 = vsub.f32 1.0, %v352
    %v356 = vsub.f32 1.0, %v353
    %v357 = vsub.f32 1.0, %v354
    %v358 = vmul.f32 %v355, -1e+30
    %v359 = vmul.f32 %v356, -1e+30
    %v360 = vmul.f32 %v357, -1e+30
    %362 = vset.pattern.permute.xlu0 0
    %363 = vperm.xlu0 %362, %v358
    %v364 = vpop.permute.xlu0 %363
    %367 = vset.pattern.permute.xlu0 0
    %368 = vperm.xlu0 %367, %v359
    %v369 = vpop.permute.xlu0 %368
    %372 = vset.pattern.permute.xlu0 0
    %373 = vperm.xlu0 %372, %v360
    %v374 = vpop.permute.xlu0 %373
    %v376 = vadd.f32 %v349, %v364
    %v377 = vadd.f32 %v350, %v369
    %v378 = vadd.f32 %v351, %v374
    %v379 = vsel %vm270, %v376, -inf
    %v380 = vsel %vm270, %v377, -inf
    %v381 = vsel %vm277, %v378, -inf
    %v382 = vmax.f32 %v379, %v380
    %v383 = vmax.f32 %v382, %v381
    %v384 = vrot.slane %v383, 4
    %v385 = vmax.f32 %v383, %v384
    %v386 = vrot.slane %v385, 2
    %v387 = vmax.f32 %v385, %v386
    %v388 = vrot.slane %v387, 1
    %v389 = vmax.f32 %v387, %v388
    %391 = vset.pattern.permute.xlu0 0
    %392 = vperm.xlu0 %391, %v77
    %v393 = vpop.permute.xlu0 %392
    %396 = vset.pattern.permute.xlu0 0
    %397 = vperm.xlu0 %396, %v78
    %v398 = vpop.permute.xlu0 %397
    %401 = vset.pattern.permute.xlu0 0
    %402 = vperm.xlu0 %401, %v79
    %v403 = vpop.permute.xlu0 %402
    %v405 = vmul.f32 %v349, %v393
    %v406 = vmul.f32 %v350, %v398
    %v407 = vmul.f32 %v351, %v403
    %v408 = vsel %vm270, %v405, 0.0
    %v409 = vsel %vm270, %v406, 0.0
    %v410 = vadd.f32 %v408, %v409
    %v411 = vsel %vm277, %v407, 0.0
    %v412 = vadd.f32 %v410, %v411
    %v413 = vrot.slane %v412, 4
    %v414 = vadd.f32 %v412, %v413
    %v415 = vrot.slane %v414, 2
    %v416 = vadd.f32 %v414, %v415
    %v417 = vrot.slane %v416, 1
    %v418 = vadd.f32 %v416, %v417
    %v419 = vmul.f32 %v418, 0.125
    %421 = vrot.lane.b32.xlu0 %v419, 64
    %v422 = vpop.permute.xlu0 %421
    %v424 = vsel %vm270, %v389, %v422
    %425 = vset.pattern.permute.xlu0 1
    %426 = vperm.xlu0 %425, %v358
    %v427 = vpop.permute.xlu0 %426
    %429 = vset.pattern.permute.xlu0 1
    %430 = vperm.xlu0 %429, %v359
    %v431 = vpop.permute.xlu0 %430
    %433 = vset.pattern.permute.xlu0 1
    %434 = vperm.xlu0 %433, %v360
    %v435 = vpop.permute.xlu0 %434
    %v437 = vadd.f32 %v349, %v427
    %v438 = vadd.f32 %v350, %v431
    %v439 = vadd.f32 %v351, %v435
    %v440 = vsel %vm270, %v437, -inf
    %v441 = vsel %vm270, %v438, -inf
    %v442 = vsel %vm277, %v439, -inf
    %v443 = vmax.f32 %v440, %v441
    %v444 = vmax.f32 %v443, %v442
    %v445 = vrot.slane %v444, 4
    %v446 = vmax.f32 %v444, %v445
    %v447 = vrot.slane %v446, 2
    %v448 = vmax.f32 %v446, %v447
    %v449 = vrot.slane %v448, 1
    %v450 = vmax.f32 %v448, %v449
    %451 = vset.pattern.permute.xlu0 1
    %452 = vperm.xlu0 %451, %v77
    %v453 = vpop.permute.xlu0 %452
    %455 = vset.pattern.permute.xlu0 1
    %456 = vperm.xlu0 %455, %v78
    %v457 = vpop.permute.xlu0 %456
    %459 = vset.pattern.permute.xlu0 1
    %460 = vperm.xlu0 %459, %v79
    %v461 = vpop.permute.xlu0 %460
    %v463 = vmul.f32 %v349, %v453
    %v464 = vmul.f32 %v350, %v457
    %v465 = vmul.f32 %v351, %v461
    %v466 = vsel %vm270, %v463, 0.0
    %v467 = vsel %vm270, %v464, 0.0
    %v468 = vadd.f32 %v466, %v467
    %v469 = vsel %vm277, %v465, 0.0
    %v470 = vadd.f32 %v468, %v469
    %v471 = vrot.slane %v470, 4
    %v472 = vadd.f32 %v470, %v471
    %v473 = vrot.slane %v472, 2
    %v474 = vadd.f32 %v472, %v473
    %v475 = vrot.slane %v474, 1
    %v476 = vadd.f32 %v474, %v475
    %v477 = vmul.f32 %v476, 0.125
    %479 = vrot.lane.b32.xlu0 %v477, 64
    %v480 = vpop.permute.xlu0 %479
    %v482 = vsel %vm270, %v450, %v480
    %v484 = vrot.slane %v482, 7
    %vm486 = vcmask 1040384
    %v487 = vsel %vm486, %v424, %v484
    %v488 = vld [vmem:[%s9] sm:$0xff]
    %v489 = vld [vmem:[%s9 + $0x8] sm:$0xff]
    %v490 = vld [vmem:[%s9 + $0x10] sm:$0xff]
    %v491 = vld [vmem:[%s9 + $0x18] sm:$0xff]
    %v492 = vld [vmem:[%s9 + $0x20] sm:$0xff]
    %v493 = vld [vmem:[%s9 + $0x28] sm:$0xff]
    %v494 = vld [vmem:[%s9 + $0x30] sm:$0xff]
    %v495 = vld [vmem:[%s9 + $0x38] sm:$0xff]
    %v496 = vld [vmem:[%s10] sm:$0x1]
    %v497 = vld [vmem:[%s11] sm:$0x1]
    %v498 = vmul.f32 %v340, %v74
    %v499 = vmul.f32 %v341, %v75
    %v500 = vmul.f32 %v342, %v76
    %v501 = vsel %vm86, %v498, 0.0
    %v502 = vsel %vm86, %v499, 0.0
    %v503 = vadd.f32 %v501, %v502
    %v504 = vsel %vm90, %v500, 0.0
    %v505 = vadd.f32 %v503, %v504
    %v506 = vrot.slane %v505, 4
    %v507 = vadd.f32 %v505, %v506
    %v508 = vrot.slane %v507, 2
    %v509 = vadd.f32 %v507, %v508
    %v510 = vrot.slane %v509, 1
    %v511 = vadd.f32 %v509, %v510
    %v512 = vpack.c.bf16 %v341, %v340
    %v513 = vpack.c.bf16 %v342, %v342
    %v515 = vsel %vm113, %v513, 0
    %517 = vmatpush.bf16.msra.mxu0 0
    %518 = vmatpush.bf16.msra.mxu0 0
    %519 = vmatpush.bf16.msra.mxu0 0
    %520 = vmatpush.bf16.msra.mxu0 0
    %521 = vmatpush.bf16.msra.mxu0 0
    %522 = vmatpush.bf16.msra.mxu0 0
    %523 = vmatpush.bf16.msra.mxu0 %v515
    %524 = vmatpush.bf16.msra.mxu0 %v512
    %525 = vmatmul.bf16.gmra.mxu0 %v108
    %v526 = vpop.f32.mrf.mxu0
    %v527 = vadd.f32 0.0, %v526
    %v528 = vpop.f32.mrf.mxu0
    %v529 = vadd.f32 0.0, %v528
    %530 = vmatmul.bf16.gmra.mxu0 %v111
    %v531 = vpop.f32.mrf.mxu0
    %v532 = vadd.f32 0.0, %v531
    %v533 = vpop.f32.mrf.mxu0
    %534 = vdwg.mxu0
    %vm535 = vcmp.gt.f32.partialorder %v527, 0.0
    %vm536 = vcmp.gt.f32.partialorder %v529, 0.0
    %vm537 = vcmp.gt.f32.partialorder %v532, 0.0
    %v538 = vrsqrt.pop %v527
    %v539 = vmul.f32 %v538, %v527
    %v540 = vmul.f32 %v539, %v538
    %v541 = vmul.f32 0.5, %v540
    %v542 = vsub.f32 1.5, %v541
    %v543 = vmul.f32 %v538, %v542
    %vm544 = vweird.f32 %v527
    %vm545 = vweird.f32 %v538
    %vm546 = vmor %vm544, %vm545
    %v547 = vsel %vm546, %v538, %v543
    %v548 = vrsqrt.pop %v529
    %v549 = vmul.f32 %v548, %v529
    %v550 = vmul.f32 %v549, %v548
    %v551 = vmul.f32 0.5, %v550
    %v552 = vsub.f32 1.5, %v551
    %v553 = vmul.f32 %v548, %v552
    %vm554 = vweird.f32 %v529
    %vm555 = vweird.f32 %v548
    %vm556 = vmor %vm554, %vm555
    %v557 = vsel %vm556, %v548, %v553
    %v558 = vrsqrt.pop %v532
    %v559 = vmul.f32 %v558, %v532
    %v560 = vmul.f32 %v559, %v558
    %v561 = vmul.f32 0.5, %v560
    %v562 = vsub.f32 1.5, %v561
    %v563 = vmul.f32 %v558, %v562
    %vm564 = vweird.f32 %v532
    %vm565 = vweird.f32 %v558
    %vm566 = vmor %vm564, %vm565
    %v567 = vsel %vm566, %v558, %v563
    %v568 = vsel %vm535, %v547, 0.0
    %v569 = vsel %vm536, %v557, 0.0
    %v570 = vsel %vm537, %v567, 0.0
    %572 = vset.pattern.permute.xlu0 0
    %573 = vperm.xlu0 %572, %v568
    %v574 = vpop.permute.xlu0 %573
    %577 = vset.pattern.permute.xlu0 0
    %578 = vperm.xlu0 %577, %v569
    %v579 = vpop.permute.xlu0 %578
    %582 = vset.pattern.permute.xlu0 0
    %583 = vperm.xlu0 %582, %v570
    %v584 = vpop.permute.xlu0 %583
    %v586 = vmul.f32 %v574, %v349
    %v587 = vmul.f32 %v579, %v350
    %v588 = vmul.f32 %v584, %v351
    %v590 = vsel %vm270, %v586, 0
    %v593 = vsel %vm270, %v587, 0
    %v596 = vsel %vm270, %v588, 0
    %598 = vmatpush.msra.mxu0 0.0
    %599 = vmatpush.msra.mxu0 0.0
    %600 = vmatpush.msra.mxu0 0.0
    %601 = vmatpush.msra.mxu0 0.0
    %602 = vmatpush.msra.mxu0 0.0
    %603 = vmatpush.msra.mxu0 0.0
    %604 = vmatpush.msra.mxu0 0.0
    %605 = vmatpush.msra.mxu0 0.0
    %606 = vmatpush.msra.mxu0 %v495
    %607 = vmatpush.msra.mxu0 %v494
    %608 = vmatpush.msra.mxu0 %v493
    %609 = vmatpush.msra.mxu0 %v492
    %610 = vmatpush.msra.mxu0 %v491
    %611 = vmatpush.msra.mxu0 %v490
    %612 = vmatpush.msra.mxu0 %v489
    %613 = vmatpush.msra.mxu0 %v488
    %614 = vmatmul.f32.gmra.mxu0 %v590
    %v615 = vpop.f32.mrf.mxu0
    %v616 = vadd.f32 0.0, %v615
    %617 = vmatmul.f32.gmra.mxu0 %v593
    %v618 = vpop.f32.mrf.mxu0
    %v619 = vadd.f32 0.0, %v618
    %620 = vmatmul.f32.gmra.mxu0 %v596
    %v621 = vpop.f32.mrf.mxu0
    %v622 = vadd.f32 0.0, %v621
    %623 = vdwg.mxu0
    %v624 = vpack.c.bf16 %v619, %v616
    %v625 = vpack.c.bf16 %v622, %v622
    %v627 = vsel %vm113, %v625, 0
    %629 = vmatpush.bf16.msra.mxu0 0
    %630 = vmatpush.bf16.msra.mxu0 0
    %631 = vmatpush.bf16.msra.mxu0 0
    %632 = vmatpush.bf16.msra.mxu0 0
    %633 = vmatpush.bf16.msra.mxu0 0
    %634 = vmatpush.bf16.msra.mxu0 0
    %635 = vmatpush.bf16.msra.mxu0 %v627
    %636 = vmatpush.bf16.msra.mxu0 %v624
    %637 = vmatmul.bf16.gmra.mxu0 %v108
    %v638 = vpop.f32.mrf.mxu0
    %v639 = vadd.f32 0.0, %v638
    %v640 = vpop.f32.mrf.mxu0
    %v641 = vadd.f32 0.0, %v640
    %642 = vmatmul.bf16.gmra.mxu0 %v111
    %v643 = vpop.f32.mrf.mxu0
    %v644 = vadd.f32 0.0, %v643
    %v645 = vpop.f32.mrf.mxu0
    %646 = vdwg.mxu0
    %v647 = vmul.f32 %v574, %v639
    %v648 = vmul.f32 %v579, %v641
    %v649 = vmul.f32 %v584, %v644
    %v651 = vperm.slane %v496, 0
    %v653 = vadd.f32 %v647, %v651
    %v654 = vadd.f32 %v648, %v651
    %v655 = vadd.f32 %v649, %v651
    %v656 = vmax.f32 %v653, 0.0
    %v657 = vmax.f32 %v654, 0.0
    %v658 = vmax.f32 %v655, 0.0
    %v659 = vmul.f32 %v656, %v340
    %v660 = vmul.f32 %v657, %v341
    %v661 = vmul.f32 %v658, %v342
    %v663 = vperm.slane %v497, 0
    %v665 = vmul.f32 %v659, %v663
    %v666 = vmul.f32 %v660, %v663
    %v667 = vmul.f32 %v661, %v663
    %v668 = vsel %vm270, %v665, 0.0
    %669 = vadd.xlane.f32.xlu0 %v668
    %v670 = vpop.xlane.xlu0 %669
    %v671 = vsel %vm270, %v666, 0.0
    %672 = vadd.xlane.f32.xlu0 %v671
    %v673 = vpop.xlane.xlu0 %672
    %v674 = vsel %vm277, %v667, 0.0
    %675 = vadd.xlane.f32.xlu0 %v674
    %v676 = vpop.xlane.xlu0 %675
    %v677 = vmul.f32 %v670, %v74
    %v678 = vmul.f32 %v673, %v75
    %v679 = vmul.f32 %v676, %v76
    %v680 = vsel %vm86, %v677, 0.0
    %v681 = vsel %vm86, %v678, 0.0
    %v682 = vadd.f32 %v680, %v681
    %v683 = vsel %vm90, %v679, 0.0
    %v684 = vadd.f32 %v682, %v683
    %v685 = vrot.slane %v684, 4
    %v686 = vadd.f32 %v684, %v685
    %v687 = vrot.slane %v686, 2
    %v688 = vadd.f32 %v686, %v687
    %v689 = vrot.slane %v688, 1
    %v690 = vadd.f32 %v688, %v689
    %vm691 = vcmp.gt.f32.partialorder %v690, %v670
    %vm692 = vcmp.gt.f32.partialorder %v690, %v673
    %vm693 = vcmp.gt.f32.partialorder %v690, %v676
    %v694 = vsel %vm691, 1, 0
    %v695 = vsel %vm692, 1, 0
    %v696 = vsel %vm693, 1, 0
    %v697 = vcvt.s32.f32 %v694
    %v698 = vcvt.s32.f32 %v695
    %v699 = vcvt.s32.f32 %v696
    %vm700 = vcmp.eq.f32.partialorder %v690, %v670
    %vm701 = vcmp.eq.f32.partialorder %v690, %v673
    %vm702 = vcmp.eq.f32.partialorder %v690, %v676
    %v703 = vsel %vm700, 1, 0
    %v704 = vsel %vm701, 1, 0
    %v705 = vsel %vm702, 1, 0
    %v706 = vcvt.s32.f32 %v703
    %v707 = vcvt.s32.f32 %v704
    %v708 = vcvt.s32.f32 %v705
    %v709 = vmul.f32 %v68, %v511
    %v710 = vmul.f32 %v69, %v511
    %v711 = vmul.f32 %v70, %v511
    %v712 = vmul.f32 %v706, %v71
    %v713 = vmul.f32 %v707, %v72
    %v714 = vmul.f32 %v708, %v73
    %v715 = vadd.f32 %v697, %v712
    %v716 = vadd.f32 %v698, %v713
    %v717 = vadd.f32 %v699, %v714
    %v718 = vmul.f32 %v709, %v715
    %v719 = vmul.f32 %v710, %v716
    %v720 = vmul.f32 %v711, %v717
    %v721 = vsel %vm86, %v718, 0.0
    %722 = vadd.xlane.f32.xlu0 %v721
    %v723 = vpop.xlane.xlu0 %722
    %v724 = vsel %vm86, %v719, 0.0
    %725 = vadd.xlane.f32.xlu0 %v724
    %v726 = vpop.xlane.xlu0 %725
    %v727 = vsel %vm90, %v720, 0.0
    %728 = vadd.xlane.f32.xlu0 %v727
    %v729 = vpop.xlane.xlu0 %728
    %vm730 = vcmp.lt.f32.partialorder %v723, 7.0
    %vm731 = vcmp.lt.f32.partialorder %v726, 7.0
    %vm732 = vcmp.lt.f32.partialorder %v729, 7.0
    %v733 = vsel %vm730, 1, 0
    %v734 = vsel %vm731, 1, 0
    %v735 = vsel %vm732, 1, 0
    %v736 = vcvt.s32.f32 %v733
    %v737 = vcvt.s32.f32 %v734
    %v738 = vcvt.s32.f32 %v735
    %v739 = vmul.f32 %v340, %v736
    %v740 = vmul.f32 %v341, %v737
    %v741 = vmul.f32 %v342, %v738
    %v742 = vtanh.pop %v670
    %v743 = vtanh.pop %v673
    %v744 = vtanh.pop %v676
    %v745 = vmul.f32 %v659, %v742
    %v746 = vmul.f32 %v660, %v743
    %v747 = vmul.f32 %v661, %v744
    %v748 = vmul.f32 %v745, %v739
    %v749 = vmul.f32 %v746, %v740
    %v750 = vmul.f32 %v747, %v741
    %v751 = vmul.f32 %v77, %v739
    %v752 = vmul.f32 %v78, %v740
    %v753 = vmul.f32 %v79, %v741
    %v754 = vsub.f32 1.0, %v751
    %v755 = vsub.f32 1.0, %v752
    %v756 = vsub.f32 1.0, %v753
    %v757 = vmul.f32 %v754, -1e+30
    %v758 = vmul.f32 %v755, -1e+30
    %v759 = vmul.f32 %v756, -1e+30
    %761 = vset.pattern.permute.xlu0 0
    %762 = vperm.xlu0 %761, %v757
    %v763 = vpop.permute.xlu0 %762
    %766 = vset.pattern.permute.xlu0 0
    %767 = vperm.xlu0 %766, %v758
    %v768 = vpop.permute.xlu0 %767
    %771 = vset.pattern.permute.xlu0 0
    %772 = vperm.xlu0 %771, %v759
    %v773 = vpop.permute.xlu0 %772
    %v775 = vadd.f32 %v748, %v763
    %v776 = vadd.f32 %v749, %v768
    %v777 = vadd.f32 %v750, %v773
    %v778 = vsel %vm270, %v775, -inf
    %v779 = vsel %vm270, %v776, -inf
    %v780 = vsel %vm277, %v777, -inf
    %v781 = vmax.f32 %v778, %v779
    %v782 = vmax.f32 %v781, %v780
    %v783 = vrot.slane %v782, 4
    %v784 = vmax.f32 %v782, %v783
    %v785 = vrot.slane %v784, 2
    %v786 = vmax.f32 %v784, %v785
    %v787 = vrot.slane %v786, 1
    %v788 = vmax.f32 %v786, %v787
    %v789 = vmul.f32 %v748, %v393
    %v790 = vmul.f32 %v749, %v398
    %v791 = vmul.f32 %v750, %v403
    %v792 = vsel %vm270, %v789, 0.0
    %v793 = vsel %vm270, %v790, 0.0
    %v794 = vadd.f32 %v792, %v793
    %v795 = vsel %vm277, %v791, 0.0
    %v796 = vadd.f32 %v794, %v795
    %v797 = vrot.slane %v796, 4
    %v798 = vadd.f32 %v796, %v797
    %v799 = vrot.slane %v798, 2
    %v800 = vadd.f32 %v798, %v799
    %v801 = vrot.slane %v800, 1
    %v802 = vadd.f32 %v800, %v801
    %v803 = vmul.f32 %v802, 0.14285715
    %805 = vrot.lane.b32.xlu0 %v803, 64
    %v806 = vpop.permute.xlu0 %805
    %v808 = vsel %vm270, %v788, %v806
    %809 = vset.pattern.permute.xlu0 1
    %810 = vperm.xlu0 %809, %v757
    %v811 = vpop.permute.xlu0 %810
    %813 = vset.pattern.permute.xlu0 1
    %814 = vperm.xlu0 %813, %v758
    %v815 = vpop.permute.xlu0 %814
    %817 = vset.pattern.permute.xlu0 1
    %818 = vperm.xlu0 %817, %v759
    %v819 = vpop.permute.xlu0 %818
    %v821 = vadd.f32 %v748, %v811
    %v822 = vadd.f32 %v749, %v815
    %v823 = vadd.f32 %v750, %v819
    %v824 = vsel %vm270, %v821, -inf
    %v825 = vsel %vm270, %v822, -inf
    %v826 = vsel %vm277, %v823, -inf
    %v827 = vmax.f32 %v824, %v825
    %v828 = vmax.f32 %v827, %v826
    %v829 = vrot.slane %v828, 4
    %v830 = vmax.f32 %v828, %v829
    %v831 = vrot.slane %v830, 2
    %v832 = vmax.f32 %v830, %v831
    %v833 = vrot.slane %v832, 1
    %v834 = vmax.f32 %v832, %v833
    %v835 = vmul.f32 %v748, %v453
    %v836 = vmul.f32 %v749, %v457
    %v837 = vmul.f32 %v750, %v461
    %v838 = vsel %vm270, %v835, 0.0
    %v839 = vsel %vm270, %v836, 0.0
    %v840 = vadd.f32 %v838, %v839
    %v841 = vsel %vm277, %v837, 0.0
    %v842 = vadd.f32 %v840, %v841
    %v843 = vrot.slane %v842, 4
    %v844 = vadd.f32 %v842, %v843
    %v845 = vrot.slane %v844, 2
    %v846 = vadd.f32 %v844, %v845
    %v847 = vrot.slane %v846, 1
    %v848 = vadd.f32 %v846, %v847
    %v849 = vmul.f32 %v848, 0.14285715
    %851 = vrot.lane.b32.xlu0 %v849, 64
    %v852 = vpop.permute.xlu0 %851
    %v854 = vsel %vm270, %v834, %v852
    %v856 = vrot.slane %v854, 7
    %v858 = vsel %vm486, %v808, %v856
    %v859 = vld [vmem:[%s12] sm:$0xff]
    %v860 = vld [vmem:[%s12 + $0x8] sm:$0xff]
    %v861 = vld [vmem:[%s12 + $0x10] sm:$0xff]
    %v862 = vld [vmem:[%s12 + $0x18] sm:$0xff]
    %v863 = vld [vmem:[%s12 + $0x20] sm:$0xff]
    %v864 = vld [vmem:[%s12 + $0x28] sm:$0xff]
    %v865 = vld [vmem:[%s12 + $0x30] sm:$0xff]
    %v866 = vld [vmem:[%s12 + $0x38] sm:$0xff]
    %v867 = vld [vmem:[%s13] sm:$0x1]
    %v868 = vld [vmem:[%s14] sm:$0x1]
    %v869 = vmul.f32 %v739, %v74
    %v870 = vmul.f32 %v740, %v75
    %v871 = vmul.f32 %v741, %v76
    %v872 = vsel %vm86, %v869, 0.0
    %v873 = vsel %vm86, %v870, 0.0
    %v874 = vadd.f32 %v872, %v873
    %v875 = vsel %vm90, %v871, 0.0
    %v876 = vadd.f32 %v874, %v875
    %v877 = vrot.slane %v876, 4
    %v878 = vadd.f32 %v876, %v877
    %v879 = vrot.slane %v878, 2
    %v880 = vadd.f32 %v878, %v879
    %v881 = vrot.slane %v880, 1
    %v882 = vadd.f32 %v880, %v881
    %v883 = vpack.c.bf16 %v740, %v739
    %v884 = vpack.c.bf16 %v741, %v741
    %v886 = vsel %vm113, %v884, 0
    %888 = vmatpush.bf16.msra.mxu0 0
    %889 = vmatpush.bf16.msra.mxu0 0
    %890 = vmatpush.bf16.msra.mxu0 0
    %891 = vmatpush.bf16.msra.mxu0 0
    %892 = vmatpush.bf16.msra.mxu0 0
    %893 = vmatpush.bf16.msra.mxu0 0
    %894 = vmatpush.bf16.msra.mxu0 %v886
    %895 = vmatpush.bf16.msra.mxu0 %v883
    %896 = vmatmul.bf16.gmra.mxu0 %v108
    %v897 = vpop.f32.mrf.mxu0
    %v898 = vadd.f32 0.0, %v897
    %v899 = vpop.f32.mrf.mxu0
    %v900 = vadd.f32 0.0, %v899
    %901 = vmatmul.bf16.gmra.mxu0 %v111
    %v902 = vpop.f32.mrf.mxu0
    %v903 = vadd.f32 0.0, %v902
    %v904 = vpop.f32.mrf.mxu0
    %905 = vdwg.mxu0
    %vm906 = vcmp.gt.f32.partialorder %v898, 0.0
    %vm907 = vcmp.gt.f32.partialorder %v900, 0.0
    %vm908 = vcmp.gt.f32.partialorder %v903, 0.0
    %v909 = vrsqrt.pop %v898
    %v910 = vmul.f32 %v909, %v898
    %v911 = vmul.f32 %v910, %v909
    %v912 = vmul.f32 0.5, %v911
    %v913 = vsub.f32 1.5, %v912
    %v914 = vmul.f32 %v909, %v913
    %vm915 = vweird.f32 %v898
    %vm916 = vweird.f32 %v909
    %vm917 = vmor %vm915, %vm916
    %v918 = vsel %vm917, %v909, %v914
    %v919 = vrsqrt.pop %v900
    %v920 = vmul.f32 %v919, %v900
    %v921 = vmul.f32 %v920, %v919
    %v922 = vmul.f32 0.5, %v921
    %v923 = vsub.f32 1.5, %v922
    %v924 = vmul.f32 %v919, %v923
    %vm925 = vweird.f32 %v900
    %vm926 = vweird.f32 %v919
    %vm927 = vmor %vm925, %vm926
    %v928 = vsel %vm927, %v919, %v924
    %v929 = vrsqrt.pop %v903
    %v930 = vmul.f32 %v929, %v903
    %v931 = vmul.f32 %v930, %v929
    %v932 = vmul.f32 0.5, %v931
    %v933 = vsub.f32 1.5, %v932
    %v934 = vmul.f32 %v929, %v933
    %vm935 = vweird.f32 %v903
    %vm936 = vweird.f32 %v929
    %vm937 = vmor %vm935, %vm936
    %v938 = vsel %vm937, %v929, %v934
    %v939 = vsel %vm906, %v918, 0.0
    %v940 = vsel %vm907, %v928, 0.0
    %v941 = vsel %vm908, %v938, 0.0
    %943 = vset.pattern.permute.xlu0 0
    %944 = vperm.xlu0 %943, %v939
    %v945 = vpop.permute.xlu0 %944
    %948 = vset.pattern.permute.xlu0 0
    %949 = vperm.xlu0 %948, %v940
    %v950 = vpop.permute.xlu0 %949
    %953 = vset.pattern.permute.xlu0 0
    %954 = vperm.xlu0 %953, %v941
    %v955 = vpop.permute.xlu0 %954
    %v957 = vmul.f32 %v945, %v748
    %v958 = vmul.f32 %v950, %v749
    %v959 = vmul.f32 %v955, %v750
    %v961 = vsel %vm270, %v957, 0
    %v964 = vsel %vm270, %v958, 0
    %v967 = vsel %vm270, %v959, 0
    %969 = vmatpush.msra.mxu0 0.0
    %970 = vmatpush.msra.mxu0 0.0
    %971 = vmatpush.msra.mxu0 0.0
    %972 = vmatpush.msra.mxu0 0.0
    %973 = vmatpush.msra.mxu0 0.0
    %974 = vmatpush.msra.mxu0 0.0
    %975 = vmatpush.msra.mxu0 0.0
    %976 = vmatpush.msra.mxu0 0.0
    %977 = vmatpush.msra.mxu0 %v866
    %978 = vmatpush.msra.mxu0 %v865
    %979 = vmatpush.msra.mxu0 %v864
    %980 = vmatpush.msra.mxu0 %v863
    %981 = vmatpush.msra.mxu0 %v862
    %982 = vmatpush.msra.mxu0 %v861
    %983 = vmatpush.msra.mxu0 %v860
    %984 = vmatpush.msra.mxu0 %v859
    %985 = vmatmul.f32.gmra.mxu0 %v961
    %v986 = vpop.f32.mrf.mxu0
    %v987 = vadd.f32 0.0, %v986
    %988 = vmatmul.f32.gmra.mxu0 %v964
    %v989 = vpop.f32.mrf.mxu0
    %v990 = vadd.f32 0.0, %v989
    %991 = vmatmul.f32.gmra.mxu0 %v967
    %v992 = vpop.f32.mrf.mxu0
    %v993 = vadd.f32 0.0, %v992
    %994 = vdwg.mxu0
    %v995 = vpack.c.bf16 %v990, %v987
    %v996 = vpack.c.bf16 %v993, %v993
    %v998 = vsel %vm113, %v996, 0
    %1000 = vmatpush.bf16.msra.mxu0 0
    %1001 = vmatpush.bf16.msra.mxu0 0
    %1002 = vmatpush.bf16.msra.mxu0 0
    %1003 = vmatpush.bf16.msra.mxu0 0
    %1004 = vmatpush.bf16.msra.mxu0 0
    %1005 = vmatpush.bf16.msra.mxu0 0
    %1006 = vmatpush.bf16.msra.mxu0 %v998
    %1007 = vmatpush.bf16.msra.mxu0 %v995
    %1008 = vmatmul.bf16.gmra.mxu0 %v108
    %v1009 = vpop.f32.mrf.mxu0
    %v1010 = vadd.f32 0.0, %v1009
    %v1011 = vpop.f32.mrf.mxu0
    %v1012 = vadd.f32 0.0, %v1011
    %1013 = vmatmul.bf16.gmra.mxu0 %v111
    %v1014 = vpop.f32.mrf.mxu0
    %v1015 = vadd.f32 0.0, %v1014
    %v1016 = vpop.f32.mrf.mxu0
    %1017 = vdwg.mxu0
    %v1018 = vmul.f32 %v945, %v1010
    %v1019 = vmul.f32 %v950, %v1012
    %v1020 = vmul.f32 %v955, %v1015
    %v1022 = vperm.slane %v867, 0
    %v1024 = vadd.f32 %v1018, %v1022
    %v1025 = vadd.f32 %v1019, %v1022
    %v1026 = vadd.f32 %v1020, %v1022
    %v1027 = vmax.f32 %v1024, 0.0
    %v1028 = vmax.f32 %v1025, 0.0
    %v1029 = vmax.f32 %v1026, 0.0
    %v1030 = vmul.f32 %v1027, %v739
    %v1031 = vmul.f32 %v1028, %v740
    %v1032 = vmul.f32 %v1029, %v741
    %v1034 = vperm.slane %v868, 0
    %v1036 = vmul.f32 %v1030, %v1034
    %v1037 = vmul.f32 %v1031, %v1034
    %v1038 = vmul.f32 %v1032, %v1034
    %v1039 = vsel %vm270, %v1036, 0.0
    %1040 = vadd.xlane.f32.xlu0 %v1039
    %v1041 = vpop.xlane.xlu0 %1040
    %v1042 = vsel %vm270, %v1037, 0.0
    %1043 = vadd.xlane.f32.xlu0 %v1042
    %v1044 = vpop.xlane.xlu0 %1043
    %v1045 = vsel %vm277, %v1038, 0.0
    %1046 = vadd.xlane.f32.xlu0 %v1045
    %v1047 = vpop.xlane.xlu0 %1046
    %v1048 = vmul.f32 %v1041, %v74
    %v1049 = vmul.f32 %v1044, %v75
    %v1050 = vmul.f32 %v1047, %v76
    %v1051 = vsel %vm86, %v1048, 0.0
    %v1052 = vsel %vm86, %v1049, 0.0
    %v1053 = vadd.f32 %v1051, %v1052
    %v1054 = vsel %vm90, %v1050, 0.0
    %v1055 = vadd.f32 %v1053, %v1054
    %v1056 = vrot.slane %v1055, 4
    %v1057 = vadd.f32 %v1055, %v1056
    %v1058 = vrot.slane %v1057, 2
    %v1059 = vadd.f32 %v1057, %v1058
    %v1060 = vrot.slane %v1059, 1
    %v1061 = vadd.f32 %v1059, %v1060
    %vm1062 = vcmp.gt.f32.partialorder %v1061, %v1041
    %vm1063 = vcmp.gt.f32.partialorder %v1061, %v1044
    %vm1064 = vcmp.gt.f32.partialorder %v1061, %v1047
    %v1065 = vsel %vm1062, 1, 0
    %v1066 = vsel %vm1063, 1, 0
    %v1067 = vsel %vm1064, 1, 0
    %v1068 = vcvt.s32.f32 %v1065
    %v1069 = vcvt.s32.f32 %v1066
    %v1070 = vcvt.s32.f32 %v1067
    %vm1071 = vcmp.eq.f32.partialorder %v1061, %v1041
    %vm1072 = vcmp.eq.f32.partialorder %v1061, %v1044
    %vm1073 = vcmp.eq.f32.partialorder %v1061, %v1047
    %v1074 = vsel %vm1071, 1, 0
    %v1075 = vsel %vm1072, 1, 0
    %v1076 = vsel %vm1073, 1, 0
    %v1077 = vcvt.s32.f32 %v1074
    %v1078 = vcvt.s32.f32 %v1075
    %v1079 = vcvt.s32.f32 %v1076
    %v1080 = vmul.f32 %v68, %v882
    %v1081 = vmul.f32 %v69, %v882
    %v1082 = vmul.f32 %v70, %v882
    %v1083 = vmul.f32 %v1077, %v71
    %v1084 = vmul.f32 %v1078, %v72
    %v1085 = vmul.f32 %v1079, %v73
    %v1086 = vadd.f32 %v1068, %v1083
    %v1087 = vadd.f32 %v1069, %v1084
    %v1088 = vadd.f32 %v1070, %v1085
    %v1089 = vmul.f32 %v1080, %v1086
    %v1090 = vmul.f32 %v1081, %v1087
    %v1091 = vmul.f32 %v1082, %v1088
    %v1092 = vsel %vm86, %v1089, 0.0
    %1093 = vadd.xlane.f32.xlu0 %v1092
    %v1094 = vpop.xlane.xlu0 %1093
    %v1095 = vsel %vm86, %v1090, 0.0
    %1096 = vadd.xlane.f32.xlu0 %v1095
    %v1097 = vpop.xlane.xlu0 %1096
    %v1098 = vsel %vm90, %v1091, 0.0
    %1099 = vadd.xlane.f32.xlu0 %v1098
    %v1100 = vpop.xlane.xlu0 %1099
    %vm1101 = vcmp.lt.f32.partialorder %v1094, 6.0
    %vm1102 = vcmp.lt.f32.partialorder %v1097, 6.0
    %vm1103 = vcmp.lt.f32.partialorder %v1100, 6.0
    %v1104 = vsel %vm1101, 1, 0
    %v1105 = vsel %vm1102, 1, 0
    %v1106 = vsel %vm1103, 1, 0
    %v1107 = vcvt.s32.f32 %v1104
    %v1108 = vcvt.s32.f32 %v1105
    %v1109 = vcvt.s32.f32 %v1106
    %v1110 = vmul.f32 %v739, %v1107
    %v1111 = vmul.f32 %v740, %v1108
    %v1112 = vmul.f32 %v741, %v1109
    %v1113 = vtanh.pop %v1041
    %v1114 = vtanh.pop %v1044
    %v1115 = vtanh.pop %v1047
    %v1116 = vmul.f32 %v1030, %v1113
    %v1117 = vmul.f32 %v1031, %v1114
    %v1118 = vmul.f32 %v1032, %v1115
    %v1119 = vmul.f32 %v1116, %v1110
    %v1120 = vmul.f32 %v1117, %v1111
    %v1121 = vmul.f32 %v1118, %v1112
    %v1122 = vmul.f32 %v77, %v1110
    %v1123 = vmul.f32 %v78, %v1111
    %v1124 = vmul.f32 %v79, %v1112
    %v1125 = vsub.f32 1.0, %v1122
    %v1126 = vsub.f32 1.0, %v1123
    %v1127 = vsub.f32 1.0, %v1124
    %v1128 = vmul.f32 %v1125, -1e+30
    %v1129 = vmul.f32 %v1126, -1e+30
    %v1130 = vmul.f32 %v1127, -1e+30
    %1132 = vset.pattern.permute.xlu0 0
    %1133 = vperm.xlu0 %1132, %v1128
    %v1134 = vpop.permute.xlu0 %1133
    %1137 = vset.pattern.permute.xlu0 0
    %1138 = vperm.xlu0 %1137, %v1129
    %v1139 = vpop.permute.xlu0 %1138
    %1142 = vset.pattern.permute.xlu0 0
    %1143 = vperm.xlu0 %1142, %v1130
    %v1144 = vpop.permute.xlu0 %1143
    %v1146 = vadd.f32 %v1119, %v1134
    %v1147 = vadd.f32 %v1120, %v1139
    %v1148 = vadd.f32 %v1121, %v1144
    %v1149 = vsel %vm270, %v1146, -inf
    %v1150 = vsel %vm270, %v1147, -inf
    %v1151 = vsel %vm277, %v1148, -inf
    %v1152 = vmax.f32 %v1149, %v1150
    %v1153 = vmax.f32 %v1152, %v1151
    %v1154 = vrot.slane %v1153, 4
    %v1155 = vmax.f32 %v1153, %v1154
    %v1156 = vrot.slane %v1155, 2
    %v1157 = vmax.f32 %v1155, %v1156
    %v1158 = vrot.slane %v1157, 1
    %v1159 = vmax.f32 %v1157, %v1158
    %v1160 = vmul.f32 %v1119, %v393
    %v1161 = vmul.f32 %v1120, %v398
    %v1162 = vmul.f32 %v1121, %v403
    %v1163 = vsel %vm270, %v1160, 0.0
    %v1164 = vsel %vm270, %v1161, 0.0
    %v1165 = vadd.f32 %v1163, %v1164
    %v1166 = vsel %vm277, %v1162, 0.0
    %v1167 = vadd.f32 %v1165, %v1166
    %v1168 = vrot.slane %v1167, 4
    %v1169 = vadd.f32 %v1167, %v1168
    %v1170 = vrot.slane %v1169, 2
    %v1171 = vadd.f32 %v1169, %v1170
    %v1172 = vrot.slane %v1171, 1
    %v1173 = vadd.f32 %v1171, %v1172
    %v1174 = vmul.f32 %v1173, 0.16666667
    %1176 = vrot.lane.b32.xlu0 %v1174, 64
    %v1177 = vpop.permute.xlu0 %1176
    %v1179 = vsel %vm270, %v1159, %v1177
    %1180 = vset.pattern.permute.xlu0 1
    %1181 = vperm.xlu0 %1180, %v1128
    %v1182 = vpop.permute.xlu0 %1181
    %1184 = vset.pattern.permute.xlu0 1
    %1185 = vperm.xlu0 %1184, %v1129
    %v1186 = vpop.permute.xlu0 %1185
    %1188 = vset.pattern.permute.xlu0 1
    %1189 = vperm.xlu0 %1188, %v1130
    %v1190 = vpop.permute.xlu0 %1189
    %v1192 = vadd.f32 %v1119, %v1182
    %v1193 = vadd.f32 %v1120, %v1186
    %v1194 = vadd.f32 %v1121, %v1190
    %v1195 = vsel %vm270, %v1192, -inf
    %v1196 = vsel %vm270, %v1193, -inf
    %v1197 = vsel %vm277, %v1194, -inf
    %v1198 = vmax.f32 %v1195, %v1196
    %v1199 = vmax.f32 %v1198, %v1197
    %v1200 = vrot.slane %v1199, 4
    %v1201 = vmax.f32 %v1199, %v1200
    %v1202 = vrot.slane %v1201, 2
    %v1203 = vmax.f32 %v1201, %v1202
    %v1204 = vrot.slane %v1203, 1
    %v1205 = vmax.f32 %v1203, %v1204
    %v1206 = vmul.f32 %v1119, %v453
    %v1207 = vmul.f32 %v1120, %v457
    %v1208 = vmul.f32 %v1121, %v461
    %v1209 = vsel %vm270, %v1206, 0.0
    %v1210 = vsel %vm270, %v1207, 0.0
    %v1211 = vadd.f32 %v1209, %v1210
    %v1212 = vsel %vm277, %v1208, 0.0
    %v1213 = vadd.f32 %v1211, %v1212
    %v1214 = vrot.slane %v1213, 4
    %v1215 = vadd.f32 %v1213, %v1214
    %v1216 = vrot.slane %v1215, 2
    %v1217 = vadd.f32 %v1215, %v1216
    %v1218 = vrot.slane %v1217, 1
    %v1219 = vadd.f32 %v1217, %v1218
    %v1220 = vmul.f32 %v1219, 0.16666667
    %1222 = vrot.lane.b32.xlu0 %v1220, 64
    %v1223 = vpop.permute.xlu0 %1222
    %v1225 = vsel %vm270, %v1205, %v1223
    %v1227 = vrot.slane %v1225, 7
    %v1229 = vsel %vm486, %v1179, %v1227
    %v1230 = vadd.f32 %v487, %v858
    %v1231 = vadd.f32 %v1230, %v1229
    %v1232 = vld [vmem:[%s15] sm:$0xff]
    %v1233 = vld [vmem:[%s15 + $0x8] sm:$0xff]
    %v1234 = vld [vmem:[%s15 + $0x10] sm:$0xff]
    %v1235 = vld [vmem:[%s15 + $0x18] sm:$0xff]
    %v1236 = vld [vmem:[%s15 + $0x20] sm:$0xff]
    %v1237 = vld [vmem:[%s15 + $0x28] sm:$0xff]
    %v1238 = vld [vmem:[%s15 + $0x30] sm:$0xff]
    %v1239 = vld [vmem:[%s15 + $0x38] sm:$0xff]
    %v1240 = vld [vmem:[%s15 + $0x40] sm:$0xff]
    %v1241 = vld [vmem:[%s15 + $0x48] sm:$0xff]
    %v1242 = vld [vmem:[%s15 + $0x50] sm:$0xff]
    %v1243 = vld [vmem:[%s15 + $0x58] sm:$0xff]
    %v1244 = vld [vmem:[%s15 + $0x60] sm:$0xff]
    %v1245 = vld [vmem:[%s15 + $0x68] sm:$0xff]
    %v1246 = vld [vmem:[%s15 + $0x70] sm:$0xff]
    %v1247 = vld [vmem:[%s15 + $0x78] sm:$0xff]
    %v1248 = vld [vmem:[%s16] sm:$0x1]
    %v1250 = vperm.slane %v1248, 0
    %1252 = vmatpush.msra.mxu0 %v1247
    %1253 = vmatpush.msra.mxu0 %v1246
    %1254 = vmatpush.msra.mxu0 %v1245
    %1255 = vmatpush.msra.mxu0 %v1244
    %1256 = vmatpush.msra.mxu0 %v1243
    %1257 = vmatpush.msra.mxu0 %v1242
    %1258 = vmatpush.msra.mxu0 %v1241
    %1259 = vmatpush.msra.mxu0 %v1240
    %1260 = vmatpush.msra.mxu0 %v1239
    %1261 = vmatpush.msra.mxu0 %v1238
    %1262 = vmatpush.msra.mxu0 %v1237
    %1263 = vmatpush.msra.mxu0 %v1236
    %1264 = vmatpush.msra.mxu0 %v1235
    %1265 = vmatpush.msra.mxu0 %v1234
    %1266 = vmatpush.msra.mxu0 %v1233
    %1267 = vmatpush.msra.mxu0 %v1232
    %1268 = vmatmul.f32.gmra.mxu0 %v1231
    %v1269 = vpop.f32.mrf.mxu0
    %v1270 = vadd.f32 %v1250, %v1269
    %1271 = vdwg.mxu0
    %v1272 = vmax.f32 %v1270, 0.0
    %v1273 = vld [vmem:[%s17] sm:$0xff]
    %v1274 = vld [vmem:[%s17 + $0x8] sm:$0xff]
    %v1275 = vld [vmem:[%s17 + $0x10] sm:$0xff]
    %v1276 = vld [vmem:[%s17 + $0x18] sm:$0xff]
    %v1277 = vld [vmem:[%s17 + $0x20] sm:$0xff]
    %v1278 = vld [vmem:[%s17 + $0x28] sm:$0xff]
    %v1279 = vld [vmem:[%s17 + $0x30] sm:$0xff]
    %v1280 = vld [vmem:[%s17 + $0x38] sm:$0xff]
    %v1281 = vld [vmem:[%s18] sm:$0x1]
    %v1283 = vperm.slane %v1281, 0
    %v1286 = vsel %vm270, %v1272, 0
    %1288 = vmatpush.msra.mxu0 0.0
    %1289 = vmatpush.msra.mxu0 0.0
    %1290 = vmatpush.msra.mxu0 0.0
    %1291 = vmatpush.msra.mxu0 0.0
    %1292 = vmatpush.msra.mxu0 0.0
    %1293 = vmatpush.msra.mxu0 0.0
    %1294 = vmatpush.msra.mxu0 0.0
    %1295 = vmatpush.msra.mxu0 0.0
    %1296 = vmatpush.msra.mxu0 %v1280
    %1297 = vmatpush.msra.mxu0 %v1279
    %1298 = vmatpush.msra.mxu0 %v1278
    %1299 = vmatpush.msra.mxu0 %v1277
    %1300 = vmatpush.msra.mxu0 %v1276
    %1301 = vmatpush.msra.mxu0 %v1275
    %1302 = vmatpush.msra.mxu0 %v1274
    %1303 = vmatpush.msra.mxu0 %v1273
    %1304 = vmatmul.f32.gmra.mxu0 %v1286
    %v1305 = vpop.f32.mrf.mxu0
    %v1306 = vadd.f32 %v1283, %v1305
    %1307 = vdwg.mxu0
    %vm1308 = vcmask 9216
    %1309 = vst.msk [vmem:[#allocation2] sm:$0x3] %vm1308, %v1306
    // Predicated region
    $region78: #{gnn_forward.1} parent=1 // pred_check
      _
    $region79: #{gnn_forward.1} parent=1 // pred_check_branch
      %1311 = sbr.rel (0) target = $region81
    $region80: #{gnn_forward.1} parent=1 // pred_region
      %1313 = vsyncadd [#allocation3], 0
      %s1315 = sshll.u32 [#allocation2], 4
      %s1316 = int_to_ptr.vmem [resolvable:$true] %s1315
      %s1317 = sshll.u32 %s19, 4
      %s1318 = int_to_ptr.hbm [resolvable:$true] %s1317
      %1320 = dma.vmem_to_hbm [thread:$0]  %s1316, 32, %s1318, [#allocation3]
    $region81: #{gnn_forward.1} parent=1 // pred_fallthru
      _
    // Predicated region
    $region82: #{gnn_forward.1} parent=1 // pred_check
      _
    $region83: #{gnn_forward.1} parent=1 // pred_check_branch
      %1322 = sbr.rel (0) target = $region85
    $region84: #{gnn_forward.1} parent=1 // pred_region
      %1324 = dma.done [#allocation3], 32
    $region85: #{gnn_forward.1} parent=1 // pred_fallthru
      _
    %1325 = vsyncpa [#allocation3], 1

</llo_original>
